<compile_context>
chip_gen: v6e
topology: v6e:2x2x1
jax: 0.10.0
libtpu: 0.0.40
codegen_flags: <defaults>
</compile_context>

<pallas_src>
import functools

import numpy as np
import jax
import jax.numpy as jnp
from jax.experimental import pallas as pl
from jax.experimental.pallas import tpu as pltpu

HIDDEN = 128
RATIO = 0.8


def _round_up(v, m):
    return ((v + m - 1) // m) * m


def _kernel1_tiles():
    # Dual-TensorCore chips (v7x) want >=2 "parallel" tiles so both cores work;
    # single-TC v5e/v6e are fastest with one full-size tile (no pipeline steps).
    try:
        kind = jax.devices()[0].device_kind.lower()
    except Exception:
        return 1
    return 2 if "v7" in kind else 1


# ---------- Pallas kernel 1: GraphConv + ReLU + TopK score + gating ---------- #
def graphconv_kernel(xroot_ref, xwn_ref, a_ref, pn_ref, hg_ref, s_ref):
    # Neighbor aggregation directly in transformed space: one full-lane MXU dot
    # (tm, N) @ (N, 128), bf16 operands, f32 accumulation.
    agg = jnp.dot(a_ref[...], xwn_ref[...], preferred_element_type=jnp.float32)
    h = jnp.maximum(xroot_ref[...] + agg, 0.0)          # relu(conv1(x)); bias folded
    # TopKPooling score: tanh(h . p / ||p||); p/||p|| precomputed outside.
    s = jnp.tanh(jnp.sum(h * pn_ref[...], axis=-1, keepdims=True))
    hg_ref[...] = h * s                                  # gating fused here
    # s is a (tm, 1) column; lane-sparse store is negligible at these sizes.
    s_ref[...] = s


def graphconv_gate(xroot, xwn_bf16, a_bf16, pn, tm):
    n_pad, h = xroot.shape
    return pl.pallas_call(
        graphconv_kernel,
        out_shape=(jax.ShapeDtypeStruct((n_pad, h), jnp.float32),
                   jax.ShapeDtypeStruct((n_pad, 1), jnp.float32)),
        grid=(n_pad // tm,),
        in_specs=[
            pl.BlockSpec((tm, h), lambda i: (i, 0)),       # x @ Wr + b  (row tile)
            pl.BlockSpec((n_pad, h), lambda i: (0, 0)),    # x @ Wn (bf16, resident)
            pl.BlockSpec((tm, n_pad), lambda i: (i, 0)),   # adjacency rows (bf16)
            pl.BlockSpec((1, h), lambda i: (0, 0)),        # p / ||p||
        ],
        out_specs=(pl.BlockSpec((tm, h), lambda i: (i, 0)),
                   pl.BlockSpec((tm, 1), lambda i: (i, 0))),
        compiler_params=pltpu.CompilerParams(
            dimension_semantics=("parallel",)),
    )(xroot, xwn_bf16, a_bf16, pn)


# ---- Pallas kernel 2: batched gmp/gap readout + MLP + log_softmax (1 step) ---- #
def pool_mlp_kernel(m2_ref, m3_ref, hg_ref, w1_ref, b1_ref, w2_ref, b2_ref,
                    w3_ref, b3_ref, out_ref):
    m2 = m2_ref[...]                                     # [B_pad, N] keep*membership
    hg = hg_ref[...]                                     # [N, H] gated node features
    cnt = jnp.sum(m2, axis=-1, keepdims=True)            # [B_pad, 1] nodes kept

    # Global mean pool for all graphs at once: one MXU matmul.
    gsum = jnp.dot(m2, hg, preferred_element_type=jnp.float32)   # [B_pad, H]
    gmean = gsum / jnp.maximum(cnt, 1.0)

    # Global max pool: short static unroll over the (<= 8) padded graphs.
    m3 = m3_ref[...]                                     # [B_pad, N, 1]
    b_pad = m3.shape[0]
    rows = []
    for b in range(b_pad):                               # b_pad is small & static
        masked = jnp.where(m3[b] > 0, hg, jnp.float32(-1e30))
        rows.append(jnp.max(masked, axis=0, keepdims=True))
    gmax = jnp.concatenate(rows, axis=0)                 # [B_pad, H]
    gmax = jnp.where(cnt > 0, gmax, 0.0)                 # empty (padded) graphs -> 0

    x1 = jnp.concatenate([gmax, gmean], axis=-1)         # [B_pad, 2H]
    z = jnp.dot(x1, w1_ref[...], preferred_element_type=jnp.float32) + b1_ref[...]
    z = jnp.maximum(z, 0.0)
    # dropout(p=0.5) is identity in eval mode.
    z = jnp.dot(z, w2_ref[...], preferred_element_type=jnp.float32) + b2_ref[...]
    z = jnp.maximum(z, 0.0)
    z = jnp.dot(z, w3_ref[...], preferred_element_type=jnp.float32) + b3_ref[...]
    # log_softmax over the 128-lane slab; padded lanes carry b3 = -1e30 -> exp()==0.
    z = z - jnp.max(z, axis=-1, keepdims=True)
    out_ref[...] = z - jnp.log(jnp.sum(jnp.exp(z), axis=-1, keepdims=True))


def pool_readout_mlp(mask2, mask3, hg, w1, b1, w2p, b2p, w3p, b3p):
    b_pad, n_pad = mask2.shape
    h = hg.shape[1]
    cp = w3p.shape[1]
    return pl.pallas_call(
        pool_mlp_kernel,
        out_shape=jax.ShapeDtypeStruct((b_pad, cp), jnp.float32),
        grid=(1,),
        in_specs=[
            pl.BlockSpec((b_pad, n_pad), lambda i: (0, 0)),      # mask (2-D, for dot)
            pl.BlockSpec((b_pad, n_pad, 1), lambda i: (0, 0, 0)),  # mask (3-D, for max)
            pl.BlockSpec((n_pad, h), lambda i: (0, 0)),          # gated node features
            pl.BlockSpec((w1.shape[0], h), lambda i: (0, 0)),
            pl.BlockSpec((1, h), lambda i: (0, 0)),
            pl.BlockSpec((h, h), lambda i: (0, 0)),
            pl.BlockSpec((1, h), lambda i: (0, 0)),
            pl.BlockSpec((h, cp), lambda i: (0, 0)),
            pl.BlockSpec((1, cp), lambda i: (0, 0)),
        ],
        out_specs=pl.BlockSpec((b_pad, cp), lambda i: (0, 0)),
        compiler_params=pltpu.CompilerParams(
            dimension_semantics=("arbitrary",)),
    )(mask2, mask3, hg, w1, b1, w2p, b2p, w3p, b3p)


# ------------------------- device-side forward (one jit) ---------------------- #
@functools.partial(jax.jit, static_argnames=("num_graphs",))
def net_forward(params, x, adj, batch, num_graphs):
    n_real, _ = x.shape
    num_tiles = _kernel1_tiles()                       # trace-time device probe
    n_pad = _round_up(n_real, 16 * num_tiles)          # pad to bf16 sublane only
    tm = n_pad // num_tiles

    # Precompute the tiny dense transforms so the in-kernel dot is (tm,N)@(N,128).
    xwn = (x @ params["Wn"]).astype(jnp.bfloat16)                 # [N, H]
    xroot = x @ params["Wr"] + params["br"]                       # [N, H], bias folded
    xwn_p = jnp.pad(xwn, ((0, n_pad - n_real), (0, 0)))
    xroot_p = jnp.pad(xroot, ((0, n_pad - n_real), (0, 0)))
    a_p = jnp.pad(adj, ((0, n_pad - n_real),
                        (0, n_pad - n_real))).astype(jnp.bfloat16)
    p = params["p"]
    pn = p * jax.lax.rsqrt(jnp.sum(p * p))                        # hoisted norm

    hg, s = graphconv_gate(xroot_p, xwn_p, a_p, pn, tm)

    # ---- per-graph top-k (ceil(RATIO * n_g)) keep mask, fully on device ----
    # TODO(synk): per-graph ranking has no clean Pallas equivalent; use lax.top_k.
    s_real = s[:n_real, 0]
    member = (batch[None, :] ==
              jnp.arange(num_graphs, dtype=batch.dtype)[:, None])  # [B, N] bool
    member_f = member.astype(jnp.float32)
    counts = jnp.sum(member_f, axis=1)                             # [B]
    # float32 ceil matches torch_geometric's topk (ratio * N computed in float32).
    k = jnp.ceil(jnp.float32(RATIO) * counts).astype(jnp.int32)    # [B]
    dense = jnp.where(member, s_real[None, :], -jnp.inf)           # [B, N]
    k_cap = min(n_real, int(np.ceil(RATIO * n_real)) + 1)
    top_vals, _ = jax.lax.top_k(dense, k_cap)                      # descending
    kth = jnp.clip(k - 1, 0, k_cap - 1)
    thresh = top_vals[jnp.arange(num_graphs), kth]                 # [B] k-th largest
    keep = ((s_real >= thresh[batch]) &
            (counts[batch] > 0)).astype(jnp.float32)               # [N] in {0,1}

    b_pad = _round_up(num_graphs, 8)
    mask = member_f * keep[None, :]                                # [B, N]
    mask2 = jnp.pad(mask, ((0, b_pad - num_graphs), (0, n_pad - n_real)))
    mask3 = mask2[:, :, None]

    # ---- lane-dense head: pad lin2/lin3 up to 128 output lanes ----
    c = params["W3"].shape[1]
    cp = _round_up(c, 128)
    k2 = params["W2"].shape[1]
    w2p = jnp.pad(params["W2"], ((0, 0), (0, HIDDEN - k2)))
    b2p = jnp.pad(params["b2"], ((0, 0), (0, HIDDEN - k2)))
    w3p = jnp.pad(params["W3"], ((0, HIDDEN - k2), (0, cp - c)))
    b3p = jnp.pad(params["b3"], ((0, 0), (0, cp - c)), constant_values=-1e30)

    out = pool_readout_mlp(mask2, mask3, hg, params["W1"], params["b1"],
                           w2p, b2p, w3p, b3p)
    return out[:num_graphs, :c], keep


# ------------------------------ numpy reference ------------------------------ #
def reference_forward(P, x, A, batch, keep, num_graphs):
    agg = A @ x
    h = np.maximum(x @ P["Wr"] + agg @ P["Wn"] + P["br"], 0.0)
    s = np.tanh((h @ P["p"].T) / np.linalg.norm(P["p"]))
    hg = h * s
    rows = []
    for b in range(num_graphs):
        sel = hg[(batch == b) & (keep > 0)]
        rows.append(np.concatenate([sel.max(axis=0), sel.mean(axis=0)]))
    x1 = np.stack(rows)
    z = np.maximum(x1 @ P["W1"] + P["b1"], 0.0)
    z = np.maximum(z @ P["W2"] + P["b2"], 0.0)
    z = z @ P["W3"] + P["b3"]
    z = z - z.max(axis=-1, keepdims=True)
    return z - np.log(np.exp(z).sum(axis=-1, keepdims=True))


if __name__ == "__main__":
    NUM_FEATURES, NUM_CLASSES = 16, 4
    GRAPH_SIZES = (40, 56, 48)            # variable-size graphs; nodes grouped by graph
    NUM_GRAPHS = len(GRAPH_SIZES)
    N = int(sum(GRAPH_SIZES))

    # deterministic parameters
    key = jax.random.PRNGKey(0)
    ks = jax.random.split(key, 12)
    sc = 0.1
    params = {
        "Wn": jax.random.normal(ks[0], (NUM_FEATURES, HIDDEN), jnp.float32) * sc,
        "Wr": jax.random.normal(ks[1], (NUM_FEATURES, HIDDEN), jnp.float32) * sc,
        "br": jax.random.normal(ks[2], (1, HIDDEN), jnp.float32) * sc,
        "p":  jax.random.normal(ks[3], (1, HIDDEN), jnp.float32),
        "W1": jax.random.normal(ks[4], (2 * HIDDEN, HIDDEN), jnp.float32) * sc,
        "b1": jax.random.normal(ks[5], (1, HIDDEN), jnp.float32) * sc,
        "W2": jax.random.normal(ks[6], (HIDDEN, 64), jnp.float32) * sc,
        "b2": jax.random.normal(ks[7], (1, 64), jnp.float32) * sc,
        "W3": jax.random.normal(ks[8], (64, NUM_CLASSES), jnp.float32) * sc,
        "b3": jax.random.normal(ks[9], (1, NUM_CLASSES), jnp.float32) * sc,
    }

    # deterministic graph batch: bidirectional rings of different sizes
    batch_np = np.concatenate(
        [np.full(n, g, np.int32) for g, n in enumerate(GRAPH_SIZES)])
    src, dst = [], []
    off = 0
    for n in GRAPH_SIZES:
        for i in range(n):
            a, b = off + i, off + (i + 1) % n
            src += [a, b]
            dst += [b, a]
        off += n
    A_np = np.zeros((N, N), np.float32)
    np.add.at(A_np, (np.array(dst), np.array(src)), 1.0)

    x = jax.random.normal(ks[10], (N, NUM_FEATURES), jnp.float32)

    out, keep = net_forward(params, x, jnp.asarray(A_np),
                            jnp.asarray(batch_np), NUM_GRAPHS)
    out = jax.block_until_ready(out)
    keep_np = np.asarray(keep)

    # verify against a plain numpy reference (loose tol for bf16 MXU operands)
    params_np = {kk: np.asarray(v) for kk, v in params.items()}
    ref = reference_forward(params_np, np.asarray(x), A_np, batch_np,
                            keep_np, NUM_GRAPHS)
    np.testing.assert_allclose(np.asarray(out), ref, atol=5e-2, rtol=5e-2)
    print("KERNEL_OK")
</pallas_src>

<mosaic_0001>
module attributes {stable_mosaic.version = 11 : i64} {
  func.func @graphconv_kernel(%arg0: i32, %arg1: memref<144x128xf32, #tpu.memory_space<vmem>>, %arg2: memref<144x128xbf16, #tpu.memory_space<vmem>>, %arg3: memref<144x144xbf16, #tpu.memory_space<vmem>>, %arg4: memref<1x128xf32, #tpu.memory_space<vmem>>, %arg5: memref<144x128xf32, #tpu.memory_space<vmem>>, %arg6: memref<144x1xf32, #tpu.memory_space<vmem>>) attributes {dimension_semantics = [#tpu.dimension_semantics<parallel>], iteration_bounds = array<i64: 1>, scalar_prefetch = 0 : i64, scratch_operands = 0 : i64, tpu.core_type = #tpu.core_type<tc>, window_params = [{transform_indices = @transform_0, window_bounds = array<i64: 144, 128>}, {pipeline_mode = #tpu.pipeline_mode<synchronous>, transform_indices = @transform_1, window_bounds = array<i64: 144, 128>}, {transform_indices = @transform_2, window_bounds = array<i64: 144, 144>}, {pipeline_mode = #tpu.pipeline_mode<synchronous>, transform_indices = @transform_3, window_bounds = array<i64: 1, 128>}, {transform_indices = @transform_4, window_bounds = array<i64: 144, 128>}, {transform_indices = @transform_5, window_bounds = array<i64: 144, 1>}]} {
    %c0 = arith.constant 0 : index
    %c0_0 = arith.constant 0 : index
    %0 = vector.load %arg3[%c0, %c0_0] : memref<144x144xbf16, #tpu.memory_space<vmem>>, vector<144x144xbf16>
    %c0_1 = arith.constant 0 : index
    %c0_2 = arith.constant 0 : index
    %1 = vector.load %arg2[%c0_1, %c0_2] : memref<144x128xbf16, #tpu.memory_space<vmem>>, vector<144x128xbf16>
    %cst = arith.constant dense<0.000000e+00> : vector<144x128xf32>
    %2 = tpu.matmul %0, %1, %cst {dimension_numbers = #tpu.dot_dimension_numbers<[1], [0], [0], [1], [0, 0, 1, 1], [], []>} : vector<144x144xbf16>, vector<144x128xbf16>, vector<144x128xf32> -> vector<144x128xf32>
    %c0_3 = arith.constant 0 : index
    %c0_4 = arith.constant 0 : index
    %3 = vector.load %arg1[%c0_3, %c0_4] : memref<144x128xf32, #tpu.memory_space<vmem>>, vector<144x128xf32>
    %4 = arith.addf %3, %2 : vector<144x128xf32>
    %cst_5 = arith.constant 0.000000e+00 : f32
    %5 = vector.broadcast %cst_5 : f32 to vector<144x128xf32>
    %6 = arith.maximumf %4, %5 : vector<144x128xf32>
    %c0_6 = arith.constant 0 : index
    %c0_7 = arith.constant 0 : index
    %7 = vector.load %arg4[%c0_6, %c0_7] : memref<1x128xf32, #tpu.memory_space<vmem>>, vector<1x128xf32>
    %8 = vector.broadcast %7 : vector<1x128xf32> to vector<144x128xf32>
    %9 = arith.mulf %6, %8 : vector<144x128xf32>
    %cst_8 = arith.constant dense<0.000000e+00> : vector<144xf32>
    %10 = vector.multi_reduction <add>, %9, %cst_8 [1] : vector<144x128xf32> to vector<144xf32>
    %11 = vector.shape_cast %10 : vector<144xf32> to vector<144x1xf32>
    %12 = math.tanh %11 : vector<144x1xf32>
    %13 = vector.broadcast %12 : vector<144x1xf32> to vector<144x128xf32>
    %14 = arith.mulf %6, %13 : vector<144x128xf32>
    %c0_9 = arith.constant 0 : index
    %c0_10 = arith.constant 0 : index
    %15 = vector.load %arg5[%c0_9, %c0_10] : memref<144x128xf32, #tpu.memory_space<vmem>>, vector<144x128xf32>
    tpu.vector_store %arg5[%c0_9, %c0_10], %14 {strides = array<i32>} : memref<144x128xf32, #tpu.memory_space<vmem>>, vector<144x128xf32>,
    %c0_11 = arith.constant 0 : index
    %c0_12 = arith.constant 0 : index
    %16 = vector.load %arg6[%c0_11, %c0_12] : memref<144x1xf32, #tpu.memory_space<vmem>>, vector<144x1xf32>
    tpu.vector_store %arg6[%c0_11, %c0_12], %12 {strides = array<i32>} : memref<144x1xf32, #tpu.memory_space<vmem>>, vector<144x1xf32>,
    return
  }
  func.func @transform_0(%arg0: i32) -> (i32, i32) {
    %c0_i32 = arith.constant 0 : i32
    %c0_i32_0 = arith.constant 0 : i32
    return %arg0, %c0_i32 : i32, i32
  }
  func.func @transform_1(%arg0: i32) -> (i32, i32) {
    %c0_i32 = arith.constant 0 : i32
    %c0_i32_0 = arith.constant 0 : i32
    %c0_i32_1 = arith.constant 0 : i32
    return %c0_i32, %c0_i32_0 : i32, i32
  }
  func.func @transform_2(%arg0: i32) -> (i32, i32) {
    %c0_i32 = arith.constant 0 : i32
    %c0_i32_0 = arith.constant 0 : i32
    return %arg0, %c0_i32 : i32, i32
  }
  func.func @transform_3(%arg0: i32) -> (i32, i32) {
    %c0_i32 = arith.constant 0 : i32
    %c0_i32_0 = arith.constant 0 : i32
    %c0_i32_1 = arith.constant 0 : i32
    return %c0_i32, %c0_i32_0 : i32, i32
  }
  func.func @transform_4(%arg0: i32) -> (i32, i32) {
    %c0_i32 = arith.constant 0 : i32
    %c0_i32_0 = arith.constant 0 : i32
    return %arg0, %c0_i32 : i32, i32
  }
  func.func @transform_5(%arg0: i32) -> (i32, i32) {
    %c0_i32 = arith.constant 0 : i32
    %c0_i32_0 = arith.constant 0 : i32
    return %arg0, %c0_i32 : i32, i32
  }
}

module attributes {stable_mosaic.version = 11 : i64} {
  func.func @pool_mlp_kernel(%arg0: i32, %arg1: memref<8x144xf32, #tpu.memory_space<vmem>>, %arg2: memref<8x144x1xf32, #tpu.memory_space<vmem>>, %arg3: memref<144x128xf32, #tpu.memory_space<vmem>>, %arg4: memref<256x128xf32, #tpu.memory_space<vmem>>, %arg5: memref<1x128xf32, #tpu.memory_space<vmem>>, %arg6: memref<128x128xf32, #tpu.memory_space<vmem>>, %arg7: memref<1x128xf32, #tpu.memory_space<vmem>>, %arg8: memref<128x128xf32, #tpu.memory_space<vmem>>, %arg9: memref<1x128xf32, #tpu.memory_space<vmem>>, %arg10: memref<8x128xf32, #tpu.memory_space<vmem>>) attributes {dimension_semantics = [#tpu.dimension_semantics<arbitrary>], iteration_bounds = array<i64: 1>, scalar_prefetch = 0 : i64, scratch_operands = 0 : i64, tpu.core_type = #tpu.core_type<tc>, window_params = [{pipeline_mode = #tpu.pipeline_mode<synchronous>, transform_indices = @transform_0, window_bounds = array<i64: 8, 144>}, {pipeline_mode = #tpu.pipeline_mode<synchronous>, transform_indices = @transform_1, window_bounds = array<i64: 8, 144, 1>}, {pipeline_mode = #tpu.pipeline_mode<synchronous>, transform_indices = @transform_2, window_bounds = array<i64: 144, 128>}, {pipeline_mode = #tpu.pipeline_mode<synchronous>, transform_indices = @transform_3, window_bounds = array<i64: 256, 128>}, {pipeline_mode = #tpu.pipeline_mode<synchronous>, transform_indices = @transform_4, window_bounds = array<i64: 1, 128>}, {pipeline_mode = #tpu.pipeline_mode<synchronous>, transform_indices = @transform_5, window_bounds = array<i64: 128, 128>}, {pipeline_mode = #tpu.pipeline_mode<synchronous>, transform_indices = @transform_6, window_bounds = array<i64: 1, 128>}, {pipeline_mode = #tpu.pipeline_mode<synchronous>, transform_indices = @transform_7, window_bounds = array<i64: 128, 128>}, {pipeline_mode = #tpu.pipeline_mode<synchronous>, transform_indices = @transform_8, window_bounds = array<i64: 1, 128>}, {pipeline_mode = #tpu.pipeline_mode<synchronous>, transform_indices = @transform_9, window_bounds = array<i64: 8, 128>}]} {
    %c0 = arith.constant 0 : index
    %c0_0 = arith.constant 0 : index
    %0 = vector.load %arg1[%c0, %c0_0] : memref<8x144xf32, #tpu.memory_space<vmem>>, vector<8x144xf32>
    %c0_1 = arith.constant 0 : index
    %c0_2 = arith.constant 0 : index
    %1 = vector.load %arg3[%c0_1, %c0_2] : memref<144x128xf32, #tpu.memory_space<vmem>>, vector<144x128xf32>
    %cst = arith.constant dense<0.000000e+00> : vector<8xf32>
    %2 = vector.multi_reduction <add>, %0, %cst [1] : vector<8x144xf32> to vector<8xf32>
    %3 = vector.shape_cast %2 : vector<8xf32> to vector<8x1xf32>
    %cst_3 = arith.constant dense<0.000000e+00> : vector<8x128xf32>
    %4 = tpu.matmul %0, %1, %cst_3 {dimension_numbers = #tpu.dot_dimension_numbers<[1], [0], [0], [1], [0, 0, 1, 1], [], []>} : vector<8x144xf32>, vector<144x128xf32>, vector<8x128xf32> -> vector<8x128xf32>
    %cst_4 = arith.constant 1.000000e+00 : f32
    %5 = vector.broadcast %cst_4 : f32 to vector<8x1xf32>
    %6 = arith.maximumf %3, %5 : vector<8x1xf32>
    %7 = vector.broadcast %6 : vector<8x1xf32> to vector<8x128xf32>
    %8 = arith.divf %4, %7 : vector<8x128xf32>
    %c0_5 = arith.constant 0 : index
    %c0_6 = arith.constant 0 : index
    %c0_7 = arith.constant 0 : index
    %9 = vector.load %arg2[%c0_5, %c0_6, %c0_7] : memref<8x144x1xf32, #tpu.memory_space<vmem>>, vector<8x144x1xf32>
    %10 = vector.extract_strided_slice %9 {offsets = [0, 0, 0], sizes = [1, 144, 1], strides = [1, 1, 1]} : vector<8x144x1xf32> to vector<1x144x1xf32>
    %11 = vector.shape_cast %10 : vector<1x144x1xf32> to vector<144x1xf32>
    %cst_8 = arith.constant 0.000000e+00 : f32
    %12 = vector.broadcast %cst_8 : f32 to vector<144x1xf32>
    %13 = arith.cmpf ogt, %11, %12 : vector<144x1xf32>
    %cst_9 = arith.constant -1.000000e+30 : f32
    %14 = vector.shape_cast %13 : vector<144x1xi1> to vector<144x1xi1>
    %15 = vector.broadcast %14 : vector<144x1xi1> to vector<144x128xi1>
    %16 = vector.broadcast %cst_9 : f32 to vector<144x128xf32>
    %17 = arith.select %15, %1, %16 : vector<144x128xi1>, vector<144x128xf32>
    %cst_10 = arith.constant dense<0xFF800000> : vector<128xf32>
    %18 = vector.multi_reduction <maximumf>, %17, %cst_10 [0] : vector<144x128xf32> to vector<128xf32>
    %19 = vector.shape_cast %18 : vector<128xf32> to vector<1x128xf32>
    %20 = vector.extract_strided_slice %9 {offsets = [1, 0, 0], sizes = [1, 144, 1], strides = [1, 1, 1]} : vector<8x144x1xf32> to vector<1x144x1xf32>
    %21 = vector.shape_cast %20 : vector<1x144x1xf32> to vector<144x1xf32>
    %cst_11 = arith.constant 0.000000e+00 : f32
    %22 = vector.broadcast %cst_11 : f32 to vector<144x1xf32>
    %23 = arith.cmpf ogt, %21, %22 : vector<144x1xf32>
    %cst_12 = arith.constant -1.000000e+30 : f32
    %24 = vector.shape_cast %23 : vector<144x1xi1> to vector<144x1xi1>
    %25 = vector.broadcast %24 : vector<144x1xi1> to vector<144x128xi1>
    %26 = vector.broadcast %cst_12 : f32 to vector<144x128xf32>
    %27 = arith.select %25, %1, %26 : vector<144x128xi1>, vector<144x128xf32>
    %cst_13 = arith.constant dense<0xFF800000> : vector<128xf32>
    %28 = vector.multi_reduction <maximumf>, %27, %cst_13 [0] : vector<144x128xf32> to vector<128xf32>
    %29 = vector.shape_cast %28 : vector<128xf32> to vector<1x128xf32>
    %30 = vector.extract_strided_slice %9 {offsets = [2, 0, 0], sizes = [1, 144, 1], strides = [1, 1, 1]} : vector<8x144x1xf32> to vector<1x144x1xf32>
    %31 = vector.shape_cast %30 : vector<1x144x1xf32> to vector<144x1xf32>
    %cst_14 = arith.constant 0.000000e+00 : f32
    %32 = vector.broadcast %cst_14 : f32 to vector<144x1xf32>
    %33 = arith.cmpf ogt, %31, %32 : vector<144x1xf32>
    %cst_15 = arith.constant -1.000000e+30 : f32
    %34 = vector.shape_cast %33 : vector<144x1xi1> to vector<144x1xi1>
    %35 = vector.broadcast %34 : vector<144x1xi1> to vector<144x128xi1>
    %36 = vector.broadcast %cst_15 : f32 to vector<144x128xf32>
    %37 = arith.select %35, %1, %36 : vector<144x128xi1>, vector<144x128xf32>
    %cst_16 = arith.constant dense<0xFF800000> : vector<128xf32>
    %38 = vector.multi_reduction <maximumf>, %37, %cst_16 [0] : vector<144x128xf32> to vector<128xf32>
    %39 = vector.shape_cast %38 : vector<128xf32> to vector<1x128xf32>
    %40 = vector.extract_strided_slice %9 {offsets = [3, 0, 0], sizes = [1, 144, 1], strides = [1, 1, 1]} : vector<8x144x1xf32> to vector<1x144x1xf32>
    %41 = vector.shape_cast %40 : vector<1x144x1xf32> to vector<144x1xf32>
    %cst_17 = arith.constant 0.000000e+00 : f32
    %42 = vector.broadcast %cst_17 : f32 to vector<144x1xf32>
    %43 = arith.cmpf ogt, %41, %42 : vector<144x1xf32>
    %cst_18 = arith.constant -1.000000e+30 : f32
    %44 = vector.shape_cast %43 : vector<144x1xi1> to vector<144x1xi1>
    %45 = vector.broadcast %44 : vector<144x1xi1> to vector<144x128xi1>
    %46 = vector.broadcast %cst_18 : f32 to vector<144x128xf32>
    %47 = arith.select %45, %1, %46 : vector<144x128xi1>, vector<144x128xf32>
    %cst_19 = arith.constant dense<0xFF800000> : vector<128xf32>
    %48 = vector.multi_reduction <maximumf>, %47, %cst_19 [0] : vector<144x128xf32> to vector<128xf32>
    %49 = vector.shape_cast %48 : vector<128xf32> to vector<1x128xf32>
    %50 = vector.extract_strided_slice %9 {offsets = [4, 0, 0], sizes = [1, 144, 1], strides = [1, 1, 1]} : vector<8x144x1xf32> to vector<1x144x1xf32>
    %51 = vector.shape_cast %50 : vector<1x144x1xf32> to vector<144x1xf32>
    %cst_20 = arith.constant 0.000000e+00 : f32
    %52 = vector.broadcast %cst_20 : f32 to vector<144x1xf32>
    %53 = arith.cmpf ogt, %51, %52 : vector<144x1xf32>
    %cst_21 = arith.constant -1.000000e+30 : f32
    %54 = vector.shape_cast %53 : vector<144x1xi1> to vector<144x1xi1>
    %55 = vector.broadcast %54 : vector<144x1xi1> to vector<144x128xi1>
    %56 = vector.broadcast %cst_21 : f32 to vector<144x128xf32>
    %57 = arith.select %55, %1, %56 : vector<144x128xi1>, vector<144x128xf32>
    %cst_22 = arith.constant dense<0xFF800000> : vector<128xf32>
    %58 = vector.multi_reduction <maximumf>, %57, %cst_22 [0] : vector<144x128xf32> to vector<128xf32>
    %59 = vector.shape_cast %58 : vector<128xf32> to vector<1x128xf32>
    %60 = vector.extract_strided_slice %9 {offsets = [5, 0, 0], sizes = [1, 144, 1], strides = [1, 1, 1]} : vector<8x144x1xf32> to vector<1x144x1xf32>
    %61 = vector.shape_cast %60 : vector<1x144x1xf32> to vector<144x1xf32>
    %cst_23 = arith.constant 0.000000e+00 : f32
    %62 = vector.broadcast %cst_23 : f32 to vector<144x1xf32>
    %63 = arith.cmpf ogt, %61, %62 : vector<144x1xf32>
    %cst_24 = arith.constant -1.000000e+30 : f32
    %64 = vector.shape_cast %63 : vector<144x1xi1> to vector<144x1xi1>
    %65 = vector.broadcast %64 : vector<144x1xi1> to vector<144x128xi1>
    %66 = vector.broadcast %cst_24 : f32 to vector<144x128xf32>
    %67 = arith.select %65, %1, %66 : vector<144x128xi1>, vector<144x128xf32>
    %cst_25 = arith.constant dense<0xFF800000> : vector<128xf32>
    %68 = vector.multi_reduction <maximumf>, %67, %cst_25 [0] : vector<144x128xf32> to vector<128xf32>
    %69 = vector.shape_cast %68 : vector<128xf32> to vector<1x128xf32>
    %70 = vector.extract_strided_slice %9 {offsets = [6, 0, 0], sizes = [1, 144, 1], strides = [1, 1, 1]} : vector<8x144x1xf32> to vector<1x144x1xf32>
    %71 = vector.shape_cast %70 : vector<1x144x1xf32> to vector<144x1xf32>
    %cst_26 = arith.constant 0.000000e+00 : f32
    %72 = vector.broadcast %cst_26 : f32 to vector<144x1xf32>
    %73 = arith.cmpf ogt, %71, %72 : vector<144x1xf32>
    %cst_27 = arith.constant -1.000000e+30 : f32
    %74 = vector.shape_cast %73 : vector<144x1xi1> to vector<144x1xi1>
    %75 = vector.broadcast %74 : vector<144x1xi1> to vector<144x128xi1>
    %76 = vector.broadcast %cst_27 : f32 to vector<144x128xf32>
    %77 = arith.select %75, %1, %76 : vector<144x128xi1>, vector<144x128xf32>
    %cst_28 = arith.constant dense<0xFF800000> : vector<128xf32>
    %78 = vector.multi_reduction <maximumf>, %77, %cst_28 [0] : vector<144x128xf32> to vector<128xf32>
    %79 = vector.shape_cast %78 : vector<128xf32> to vector<1x128xf32>
    %80 = vector.extract_strided_slice %9 {offsets = [7, 0, 0], sizes = [1, 144, 1], strides = [1, 1, 1]} : vector<8x144x1xf32> to vector<1x144x1xf32>
    %81 = vector.shape_cast %80 : vector<1x144x1xf32> to vector<144x1xf32>
    %cst_29 = arith.constant 0.000000e+00 : f32
    %82 = vector.broadcast %cst_29 : f32 to vector<144x1xf32>
    %83 = arith.cmpf ogt, %81, %82 : vector<144x1xf32>
    %cst_30 = arith.constant -1.000000e+30 : f32
    %84 = vector.shape_cast %83 : vector<144x1xi1> to vector<144x1xi1>
    %85 = vector.broadcast %84 : vector<144x1xi1> to vector<144x128xi1>
    %86 = vector.broadcast %cst_30 : f32 to vector<144x128xf32>
    %87 = arith.select %85, %1, %86 : vector<144x128xi1>, vector<144x128xf32>
    %cst_31 = arith.constant dense<0xFF800000> : vector<128xf32>
    %88 = vector.multi_reduction <maximumf>, %87, %cst_31 [0] : vector<144x128xf32> to vector<128xf32>
    %89 = vector.shape_cast %88 : vector<128xf32> to vector<1x128xf32>
    %90 = tpu.concatenate %19, %29, %39, %49, %59, %69, %79, %89 in 0 : vector<1x128xf32>, vector<1x128xf32>, vector<1x128xf32>, vector<1x128xf32>, vector<1x128xf32>, vector<1x128xf32>, vector<1x128xf32>, vector<1x128xf32> -> vector<8x128xf32>
    %cst_32 = arith.constant 0.000000e+00 : f32
    %91 = vector.broadcast %cst_32 : f32 to vector<8x1xf32>
    %92 = arith.cmpf ogt, %3, %91 : vector<8x1xf32>
    %cst_33 = arith.constant 0.000000e+00 : f32
    %93 = vector.shape_cast %92 : vector<8x1xi1> to vector<8x1xi1>
    %94 = vector.broadcast %93 : vector<8x1xi1> to vector<8x128xi1>
    %95 = vector.broadcast %cst_33 : f32 to vector<8x128xf32>
    %96 = arith.select %94, %90, %95 : vector<8x128xi1>, vector<8x128xf32>
    %97 = tpu.concatenate %96, %8 in 1 : vector<8x128xf32>, vector<8x128xf32> -> vector<8x256xf32>
    %c0_34 = arith.constant 0 : index
    %c0_35 = arith.constant 0 : index
    %98 = vector.load %arg4[%c0_34, %c0_35] : memref<256x128xf32, #tpu.memory_space<vmem>>, vector<256x128xf32>
    %cst_36 = arith.constant dense<0.000000e+00> : vector<8x128xf32>
    %99 = tpu.matmul %97, %98, %cst_36 {dimension_numbers = #tpu.dot_dimension_numbers<[1], [0], [0], [1], [0, 0, 1, 1], [], []>} : vector<8x256xf32>, vector<256x128xf32>, vector<8x128xf32> -> vector<8x128xf32>
    %c0_37 = arith.constant 0 : index
    %c0_38 = arith.constant 0 : index
    %100 = vector.load %arg5[%c0_37, %c0_38] : memref<1x128xf32, #tpu.memory_space<vmem>>, vector<1x128xf32>
    %101 = vector.broadcast %100 : vector<1x128xf32> to vector<8x128xf32>
    %102 = arith.addf %99, %101 : vector<8x128xf32>
    %cst_39 = arith.constant 0.000000e+00 : f32
    %103 = vector.broadcast %cst_39 : f32 to vector<8x128xf32>
    %104 = arith.maximumf %102, %103 : vector<8x128xf32>
    %c0_40 = arith.constant 0 : index
    %c0_41 = arith.constant 0 : index
    %105 = vector.load %arg6[%c0_40, %c0_41] : memref<128x128xf32, #tpu.memory_space<vmem>>, vector<128x128xf32>
    %cst_42 = arith.constant dense<0.000000e+00> : vector<8x128xf32>
    %106 = tpu.matmul %104, %105, %cst_42 {dimension_numbers = #tpu.dot_dimension_numbers<[1], [0], [0], [1], [0, 0, 1, 1], [], []>} : vector<8x128xf32>, vector<128x128xf32>, vector<8x128xf32> -> vector<8x128xf32>
    %c0_43 = arith.constant 0 : index
    %c0_44 = arith.constant 0 : index
    %107 = vector.load %arg7[%c0_43, %c0_44] : memref<1x128xf32, #tpu.memory_space<vmem>>, vector<1x128xf32>
    %108 = vector.broadcast %107 : vector<1x128xf32> to vector<8x128xf32>
    %109 = arith.addf %106, %108 : vector<8x128xf32>
    %cst_45 = arith.constant 0.000000e+00 : f32
    %110 = vector.broadcast %cst_45 : f32 to vector<8x128xf32>
    %111 = arith.maximumf %109, %110 : vector<8x128xf32>
    %c0_46 = arith.constant 0 : index
    %c0_47 = arith.constant 0 : index
    %112 = vector.load %arg8[%c0_46, %c0_47] : memref<128x128xf32, #tpu.memory_space<vmem>>, vector<128x128xf32>
    %cst_48 = arith.constant dense<0.000000e+00> : vector<8x128xf32>
    %113 = tpu.matmul %111, %112, %cst_48 {dimension_numbers = #tpu.dot_dimension_numbers<[1], [0], [0], [1], [0, 0, 1, 1], [], []>} : vector<8x128xf32>, vector<128x128xf32>, vector<8x128xf32> -> vector<8x128xf32>
    %c0_49 = arith.constant 0 : index
    %c0_50 = arith.constant 0 : index
    %114 = vector.load %arg9[%c0_49, %c0_50] : memref<1x128xf32, #tpu.memory_space<vmem>>, vector<1x128xf32>
    %115 = vector.broadcast %114 : vector<1x128xf32> to vector<8x128xf32>
    %116 = arith.addf %113, %115 : vector<8x128xf32>
    %cst_51 = arith.constant dense<0xFF800000> : vector<8xf32>
    %117 = vector.multi_reduction <maximumf>, %116, %cst_51 [1] : vector<8x128xf32> to vector<8xf32>
    %118 = vector.shape_cast %117 : vector<8xf32> to vector<8x1xf32>
    %119 = vector.broadcast %118 : vector<8x1xf32> to vector<8x128xf32>
    %120 = arith.subf %116, %119 : vector<8x128xf32>
    %121 = math.exp %120 : vector<8x128xf32>
    %cst_52 = arith.constant dense<0.000000e+00> : vector<8xf32>
    %122 = vector.multi_reduction <add>, %121, %cst_52 [1] : vector<8x128xf32> to vector<8xf32>
    %123 = vector.shape_cast %122 : vector<8xf32> to vector<8x1xf32>
    %124 = math.log %123 : vector<8x1xf32>
    %125 = vector.broadcast %124 : vector<8x1xf32> to vector<8x128xf32>
    %126 = arith.subf %120, %125 : vector<8x128xf32>
    %c0_53 = arith.constant 0 : index
    %c0_54 = arith.constant 0 : index
    %127 = vector.load %arg10[%c0_53, %c0_54] : memref<8x128xf32, #tpu.memory_space<vmem>>, vector<8x128xf32>
    tpu.vector_store %arg10[%c0_53, %c0_54], %126 {strides = array<i32>} : memref<8x128xf32, #tpu.memory_space<vmem>>, vector<8x128xf32>,
    return
  }
  func.func @transform_0(%arg0: i32) -> (i32, i32) {
    %c0_i32 = arith.constant 0 : i32
    %c0_i32_0 = arith.constant 0 : i32
    %c0_i32_1 = arith.constant 0 : i32
    return %c0_i32, %c0_i32_0 : i32, i32
  }
  func.func @transform_1(%arg0: i32) -> (i32, i32, i32) {
    %c0_i32 = arith.constant 0 : i32
    %c0_i32_0 = arith.constant 0 : i32
    %c0_i32_1 = arith.constant 0 : i32
    %c0_i32_2 = arith.constant 0 : i32
    return %c0_i32, %c0_i32_0, %c0_i32_1 : i32, i32, i32
  }
  func.func @transform_2(%arg0: i32) -> (i32, i32) {
    %c0_i32 = arith.constant 0 : i32
    %c0_i32_0 = arith.constant 0 : i32
    %c0_i32_1 = arith.constant 0 : i32
    return %c0_i32, %c0_i32_0 : i32, i32
  }
  func.func @transform_3(%arg0: i32) -> (i32, i32) {
    %c0_i32 = arith.constant 0 : i32
    %c0_i32_0 = arith.constant 0 : i32
    %c0_i32_1 = arith.constant 0 : i32
    return %c0_i32, %c0_i32_0 : i32, i32
  }
  func.func @transform_4(%arg0: i32) -> (i32, i32) {
    %c0_i32 = arith.constant 0 : i32
    %c0_i32_0 = arith.constant 0 : i32
    %c0_i32_1 = arith.constant 0 : i32
    return %c0_i32, %c0_i32_0 : i32, i32
  }
  func.func @transform_5(%arg0: i32) -> (i32, i32) {
    %c0_i32 = arith.constant 0 : i32
    %c0_i32_0 = arith.constant 0 : i32
    %c0_i32_1 = arith.constant 0 : i32
    return %c0_i32, %c0_i32_0 : i32, i32
  }
  func.func @transform_6(%arg0: i32) -> (i32, i32) {
    %c0_i32 = arith.constant 0 : i32
    %c0_i32_0 = arith.constant 0 : i32
    %c0_i32_1 = arith.constant 0 : i32
    return %c0_i32, %c0_i32_0 : i32, i32
  }
  func.func @transform_7(%arg0: i32) -> (i32, i32) {
    %c0_i32 = arith.constant 0 : i32
    %c0_i32_0 = arith.constant 0 : i32
    %c0_i32_1 = arith.constant 0 : i32
    return %c0_i32, %c0_i32_0 : i32, i32
  }
  func.func @transform_8(%arg0: i32) -> (i32, i32) {
    %c0_i32 = arith.constant 0 : i32
    %c0_i32_0 = arith.constant 0 : i32
    %c0_i32_1 = arith.constant 0 : i32
    return %c0_i32, %c0_i32_0 : i32, i32
  }
  func.func @transform_9(%arg0: i32) -> (i32, i32) {
    %c0_i32 = arith.constant 0 : i32
    %c0_i32_0 = arith.constant 0 : i32
    %c0_i32_1 = arith.constant 0 : i32
    return %c0_i32, %c0_i32_0 : i32, i32
  }
}

</mosaic_0001>

<llo_original>
// kernel: net_forward.2
$region0: #{net_forward.2}
  #allocation0 [shape = 'u32[]', space=smem, size = 0x4, offset = 0x4, fixed_abs, tag = 'smem constant byte address 0x4 - core index']
  #allocation1 [shape = 'u32[144,128]{1,0:T(1,128)}', space=vmem, size = 0x12000, scoped, tag = 'internal scratch']
  %s0 = inlined_call_operand.vmem [shape: f32[144,128], index: 0, kind: input, shape index: {}]
  %s1 = inlined_call_operand.vmem [shape: bf16[144,128], index: 1, kind: input, shape index: {}]
  %s2 = inlined_call_operand.vmem [shape: bf16[144,144], index: 2, kind: input, shape index: {}]
  %s3 = inlined_call_operand.vmem [shape: f32[1,128], index: 3, kind: input, shape index: {}]
  %s4 = inlined_call_operand.vmem [shape: f32[144,128], index: 4, kind: output, shape index: {0}]
  %s5 = inlined_call_operand.vmem [shape: f32[144,1], index: 5, kind: output, shape index: {1}]
  %6 = xla_tuple %s4, %s5
  %s7 = sld [smem:[#allocation0]]
  $region34: #{net_forward.2} parent=0
    _
  %s9 = ssub.s32 1, %s7
  %s10 = scalar_select 0, %s9, %s7
  // Predicated region
  $region2: #{net_forward.2} parent=0 // pred_check
    _
  $region3: #{net_forward.2} parent=0 // pred_check_branch
    %12 = sbr.rel (0) target = $region5
  $region4: #{net_forward.2} parent=0 // pred_region
    _
  $region5: #{net_forward.2} parent=0 // pred_fallthru
    _
  // Predicated region
  $region6: #{net_forward.2} parent=0 // pred_check
    _
  $region7: #{net_forward.2} parent=0 // pred_check_branch
    %14 = sbr.rel (0) target = $region9
  $region8: #{net_forward.2} parent=0 // pred_region
    _
  $region9: #{net_forward.2} parent=0 // pred_fallthru
    _
  // Predicated region
  $region10: #{net_forward.2} parent=0 // pred_check
    _
  $region11: #{net_forward.2} parent=0 // pred_check_branch
    %16 = sbr.rel (0) target = $region13
  $region12: #{net_forward.2} parent=0 // pred_region
    _
  $region13: #{net_forward.2} parent=0 // pred_fallthru
    _
  // Predicated region
  $region14: #{net_forward.2} parent=0 // pred_check
    _
  $region15: #{net_forward.2} parent=0 // pred_check_branch
    %18 = sbr.rel (0) target = $region17
  $region16: #{net_forward.2} parent=0 // pred_region
    _
  $region17: #{net_forward.2} parent=0 // pred_fallthru
    _
  %v20 = vld [vmem:[%s2] sm:$0xff]
  %v21 = vld [vmem:[%s2 + $0x8] sm:$0xff]
  %v22 = vld [vmem:[%s2 + $0x10] sm:$0xff]
  %v23 = vld [vmem:[%s2 + $0x18] sm:$0xff]
  %v24 = vld [vmem:[%s2 + $0x20] sm:$0xff]
  %v25 = vld [vmem:[%s2 + $0x28] sm:$0xff]
  %v26 = vld [vmem:[%s2 + $0x30] sm:$0xff]
  %v27 = vld [vmem:[%s2 + $0x38] sm:$0xff]
  %v28 = vld [vmem:[%s2 + $0x40] sm:$0xff]
  %v29 = vld [vmem:[%s2 + $0x48] sm:$0xff]
  %v30 = vld [vmem:[%s2 + $0x50] sm:$0xff]
  %v31 = vld [vmem:[%s2 + $0x58] sm:$0xff]
  %v32 = vld [vmem:[%s2 + $0x60] sm:$0xff]
  %v33 = vld [vmem:[%s2 + $0x68] sm:$0xff]
  %v34 = vld [vmem:[%s2 + $0x70] sm:$0xff]
  %v35 = vld [vmem:[%s2 + $0x78] sm:$0xff]
  %v36 = vld [vmem:[%s2 + $0x80] sm:$0xff]
  %v37 = vld [vmem:[%s2 + $0x88] sm:$0xff]
  %v38 = vld [vmem:[%s1] sm:$0xf]
  %v39 = vld [vmem:[%s1 + $0x4] sm:$0xf]
  %v40 = vld [vmem:[%s1 + $0x8] sm:$0xf]
  %v41 = vld [vmem:[%s1 + $0xc] sm:$0xf]
  %v42 = vld [vmem:[%s1 + $0x10] sm:$0xf]
  %v43 = vld [vmem:[%s1 + $0x14] sm:$0xf]
  %v44 = vld [vmem:[%s1 + $0x18] sm:$0xf]
  %v45 = vld [vmem:[%s1 + $0x1c] sm:$0xf]
  %v46 = vld [vmem:[%s1 + $0x20] sm:$0xf]
  %v47 = vld [vmem:[%s1 + $0x24] sm:$0xf]
  %v48 = vld [vmem:[%s1 + $0x28] sm:$0xf]
  %v49 = vld [vmem:[%s1 + $0x2c] sm:$0xf]
  %v50 = vld [vmem:[%s1 + $0x30] sm:$0xf]
  %v51 = vld [vmem:[%s1 + $0x34] sm:$0xf]
  %v52 = vld [vmem:[%s1 + $0x38] sm:$0xf]
  %v53 = vld [vmem:[%s1 + $0x3c] sm:$0xf]
  %v54 = vld [vmem:[%s1 + $0x40] sm:$0xf]
  %v55 = vld [vmem:[%s1 + $0x44] sm:$0xf]
  %v74 = vunpack.c.l.b16 %v20
  %v75 = vunpack.c.h.b16 %v20
  %v76 = vunpack.c.l.b16 %v21
  %v77 = vunpack.c.h.b16 %v21
  %v78 = vunpack.c.l.b16 %v22
  %v79 = vunpack.c.h.b16 %v22
  %v80 = vunpack.c.l.b16 %v23
  %v81 = vunpack.c.h.b16 %v23
  %v82 = vunpack.c.l.b16 %v24
  %v83 = vunpack.c.h.b16 %v24
  %v84 = vunpack.c.l.b16 %v25
  %v85 = vunpack.c.h.b16 %v25
  %v86 = vunpack.c.l.b16 %v26
  %v87 = vunpack.c.h.b16 %v26
  %v88 = vunpack.c.l.b16 %v27
  %v89 = vunpack.c.h.b16 %v27
  %v90 = vunpack.c.l.b16 %v28
  %v91 = vunpack.c.h.b16 %v28
  %v92 = vunpack.c.l.b16 %v29
  %v93 = vunpack.c.h.b16 %v29
  %v94 = vunpack.c.l.b16 %v30
  %v95 = vunpack.c.h.b16 %v30
  %v96 = vunpack.c.l.b16 %v31
  %v97 = vunpack.c.h.b16 %v31
  %v98 = vunpack.c.l.b16 %v32
  %v99 = vunpack.c.h.b16 %v32
  %v100 = vunpack.c.l.b16 %v33
  %v101 = vunpack.c.h.b16 %v33
  %v102 = vunpack.c.l.b16 %v34
  %v103 = vunpack.c.h.b16 %v34
  %v104 = vunpack.c.l.b16 %v35
  %v105 = vunpack.c.h.b16 %v35
  %v106 = vunpack.c.l.b16 %v36
  %v107 = vunpack.c.h.b16 %v36
  %v108 = vunpack.c.l.b16 %v37
  %v109 = vunpack.c.h.b16 %v37
  %v110 = vpack.c.b16 %v76, %v74
  %v111 = vpack.c.b16 %v77, %v75
  %v112 = vpack.c.b16 %v80, %v78
  %v113 = vpack.c.b16 %v81, %v79
  %v114 = vpack.c.b16 %v84, %v82
  %v115 = vpack.c.b16 %v85, %v83
  %v116 = vpack.c.b16 %v88, %v86
  %v117 = vpack.c.b16 %v89, %v87
  %v118 = vpack.c.b16 %v92, %v90
  %v119 = vpack.c.b16 %v93, %v91
  %v120 = vpack.c.b16 %v96, %v94
  %v121 = vpack.c.b16 %v97, %v95
  %v122 = vpack.c.b16 %v100, %v98
  %v123 = vpack.c.b16 %v101, %v99
  %v124 = vpack.c.b16 %v104, %v102
  %v125 = vpack.c.b16 %v105, %v103
  %v126 = vpack.c.b16 %v108, %v106
  %v127 = vpack.c.b16 %v109, %v107
  %v155 = vunpack.c.l.b16 %v38
  %v156 = vunpack.c.l.b16 %v39
  %v157 = vunpack.c.l.b16 %v40
  %v158 = vunpack.c.l.b16 %v41
  %v159 = vunpack.c.l.b16 %v42
  %v160 = vunpack.c.l.b16 %v43
  %v161 = vunpack.c.l.b16 %v44
  %v162 = vunpack.c.l.b16 %v45
  %v163 = vunpack.c.l.b16 %v46
  %v164 = vunpack.c.l.b16 %v47
  %v165 = vunpack.c.l.b16 %v48
  %v166 = vunpack.c.l.b16 %v49
  %v167 = vunpack.c.l.b16 %v50
  %v168 = vunpack.c.l.b16 %v51
  %v169 = vunpack.c.l.b16 %v52
  %v170 = vunpack.c.l.b16 %v53
  %v171 = vunpack.c.l.b16 %v54
  %v172 = vunpack.c.l.b16 %v55
  %v173 = vpack.c.b16 %v156, %v155
  %v174 = vpack.c.b16 %v158, %v157
  %v175 = vpack.c.b16 %v160, %v159
  %v176 = vpack.c.b16 %v162, %v161
  %v177 = vpack.c.b16 %v164, %v163
  %v178 = vpack.c.b16 %v166, %v165
  %v179 = vpack.c.b16 %v168, %v167
  %v180 = vpack.c.b16 %v170, %v169
  %v181 = vpack.c.b16 %v172, %v171
  %vm191 = vcmask 130048
  %v193 = vsel %vm191, %v111, 0
  %v196 = vsel %vm191, %v113, 0
  %v199 = vsel %vm191, %v115, 0
  %v202 = vsel %vm191, %v117, 0
  %v205 = vsel %vm191, %v119, 0
  %v208 = vsel %vm191, %v121, 0
  %v211 = vsel %vm191, %v123, 0
  %v214 = vsel %vm191, %v125, 0
  %v217 = vsel %vm191, %v127, 0
  %219 = vmatprep.subr.bf16.mxu0 0
  %220 = vmatpush1.bf16.msra.mxu0 %v180
  %221 = vmatprep.subr.bf16.mxu0 0
  %222 = vmatpush1.bf16.msra.mxu0 %v179
  %223 = vmatprep.subr.bf16.mxu0 0
  %224 = vmatpush1.bf16.msra.mxu0 %v178
  %225 = vmatprep.subr.bf16.mxu0 0
  %226 = vmatpush1.bf16.msra.mxu0 %v177
  %227 = vmatprep.subr.bf16.mxu0 0
  %228 = vmatpush1.bf16.msra.mxu0 %v176
  %229 = vmatprep.subr.bf16.mxu0 0
  %230 = vmatpush1.bf16.msra.mxu0 %v175
  %231 = vmatprep.subr.bf16.mxu0 0
  %232 = vmatpush1.bf16.msra.mxu0 %v174
  %233 = vmatprep.subr.bf16.mxu0 0
  %234 = vmatpush1.bf16.msra.mxu0 %v173
  %235 = vmatprep.subr.bf16.mxu0 0
  %236 = vmatpush2.bf16.msra.mxu0 0
  %237 = vmatprep.subr.bf16.mxu0 0
  %238 = vmatpush2.bf16.msra.mxu0 0
  %239 = vmatprep.subr.bf16.mxu0 0
  %240 = vmatpush2.bf16.msra.mxu0 0
  %241 = vmatprep.subr.bf16.mxu0 0
  %242 = vmatpush2.bf16.msra.mxu0 0
  %243 = vmatprep.subr.bf16.mxu0 0
  %244 = vmatpush2.bf16.msra.mxu0 0
  %245 = vmatprep.subr.bf16.mxu0 0
  %246 = vmatpush2.bf16.msra.mxu0 0
  %247 = vmatprep.subr.bf16.mxu0 0
  %248 = vmatpush2.bf16.msra.mxu0 0
  %249 = vmatprep.subr.bf16.mxu0 0
  %250 = vmatpush2.bf16.msra.mxu0 %v181
  %251 = vmatprep.mubr.bf16.mxu0 %v193
  %252 = vmatmul.mubr.bf16.gmra.mxu0 %v110
  %v253 = vpop.f32.mrf.mxu0
  %v254 = vadd.f32 0.0, %v253
  %v255 = vpop.f32.mrf.mxu0
  %v256 = vpop.f32.mrf.mxu0
  %v257 = vadd.f32 0.0, %v256
  %v258 = vpop.f32.mrf.mxu0
  %259 = vmatprep.mubr.bf16.mxu0 %v196
  %260 = vmatmul.mubr.bf16.gmra.mxu0 %v112
  %v261 = vpop.f32.mrf.mxu0
  %v262 = vadd.f32 0.0, %v261
  %v263 = vpop.f32.mrf.mxu0
  %v264 = vpop.f32.mrf.mxu0
  %v265 = vadd.f32 0.0, %v264
  %v266 = vpop.f32.mrf.mxu0
  %267 = vmatprep.mubr.bf16.mxu0 %v199
  %268 = vmatmul.mubr.bf16.gmra.mxu0 %v114
  %v269 = vpop.f32.mrf.mxu0
  %v270 = vadd.f32 0.0, %v269
  %v271 = vpop.f32.mrf.mxu0
  %v272 = vpop.f32.mrf.mxu0
  %v273 = vadd.f32 0.0, %v272
  %v274 = vpop.f32.mrf.mxu0
  %275 = vmatprep.mubr.bf16.mxu0 %v202
  %276 = vmatmul.mubr.bf16.gmra.mxu0 %v116
  %v277 = vpop.f32.mrf.mxu0
  %v278 = vadd.f32 0.0, %v277
  %v279 = vpop.f32.mrf.mxu0
  %v280 = vpop.f32.mrf.mxu0
  %v281 = vadd.f32 0.0, %v280
  %v282 = vpop.f32.mrf.mxu0
  %283 = vmatprep.mubr.bf16.mxu0 %v205
  %284 = vmatmul.mubr.bf16.gmra.mxu0 %v118
  %v285 = vpop.f32.mrf.mxu0
  %v286 = vadd.f32 0.0, %v285
  %v287 = vpop.f32.mrf.mxu0
  %v288 = vpop.f32.mrf.mxu0
  %v289 = vadd.f32 0.0, %v288
  %v290 = vpop.f32.mrf.mxu0
  %291 = vmatprep.mubr.bf16.mxu0 %v208
  %292 = vmatmul.mubr.bf16.gmra.mxu0 %v120
  %v293 = vpop.f32.mrf.mxu0
  %v294 = vadd.f32 0.0, %v293
  %v295 = vpop.f32.mrf.mxu0
  %v296 = vpop.f32.mrf.mxu0
  %v297 = vadd.f32 0.0, %v296
  %v298 = vpop.f32.mrf.mxu0
  %299 = vmatprep.mubr.bf16.mxu0 %v211
  %300 = vmatmul.mubr.bf16.gmra.mxu0 %v122
  %v301 = vpop.f32.mrf.mxu0
  %v302 = vadd.f32 0.0, %v301
  %v303 = vpop.f32.mrf.mxu0
  %v304 = vpop.f32.mrf.mxu0
  %v305 = vadd.f32 0.0, %v304
  %v306 = vpop.f32.mrf.mxu0
  %307 = vmatprep.mubr.bf16.mxu0 %v214
  %308 = vmatmul.mubr.bf16.gmra.mxu0 %v124
  %v309 = vpop.f32.mrf.mxu0
  %v310 = vadd.f32 0.0, %v309
  %v311 = vpop.f32.mrf.mxu0
  %v312 = vpop.f32.mrf.mxu0
  %v313 = vadd.f32 0.0, %v312
  %v314 = vpop.f32.mrf.mxu0
  %315 = vmatprep.mubr.bf16.mxu0 %v217
  %316 = vmatmul.mubr.bf16.gmra.mxu0 %v126
  %v317 = vpop.f32.mrf.mxu0
  %v318 = vadd.f32 0.0, %v317
  %v319 = vpop.f32.mrf.mxu0
  %v320 = vpop.f32.mrf.mxu0
  %v321 = vadd.f32 0.0, %v320
  %v322 = vpop.f32.mrf.mxu0
  %323 = vdwg.mxu0
  %v324 = vld [vmem:[%s0] sm:$0xff]
  %v325 = vld [vmem:[%s0 + $0x8] sm:$0xff]
  %v326 = vld [vmem:[%s0 + $0x10] sm:$0xff]
  %v327 = vld [vmem:[%s0 + $0x18] sm:$0xff]
  %v328 = vld [vmem:[%s0 + $0x20] sm:$0xff]
  %v329 = vld [vmem:[%s0 + $0x28] sm:$0xff]
  %v330 = vld [vmem:[%s0 + $0x30] sm:$0xff]
  %v331 = vld [vmem:[%s0 + $0x38] sm:$0xff]
  %v332 = vld [vmem:[%s0 + $0x40] sm:$0xff]
  %v333 = vld [vmem:[%s0 + $0x48] sm:$0xff]
  %v334 = vld [vmem:[%s0 + $0x50] sm:$0xff]
  %v335 = vld [vmem:[%s0 + $0x58] sm:$0xff]
  %v336 = vld [vmem:[%s0 + $0x60] sm:$0xff]
  %v337 = vld [vmem:[%s0 + $0x68] sm:$0xff]
  %v338 = vld [vmem:[%s0 + $0x70] sm:$0xff]
  %v339 = vld [vmem:[%s0 + $0x78] sm:$0xff]
  %v340 = vld [vmem:[%s0 + $0x80] sm:$0xff]
  %v341 = vld [vmem:[%s0 + $0x88] sm:$0xff]
  %v342 = vadd.f32 %v324, %v254
  %v343 = vadd.f32 %v325, %v257
  %v344 = vadd.f32 %v326, %v262
  %v345 = vadd.f32 %v327, %v265
  %v346 = vadd.f32 %v328, %v270
  %v347 = vadd.f32 %v329, %v273
  %v348 = vadd.f32 %v330, %v278
  %v349 = vadd.f32 %v331, %v281
  %v350 = vadd.f32 %v332, %v286
  %v351 = vadd.f32 %v333, %v289
  %v352 = vadd.f32 %v334, %v294
  %v353 = vadd.f32 %v335, %v297
  %v354 = vadd.f32 %v336, %v302
  %v355 = vadd.f32 %v337, %v305
  %v356 = vadd.f32 %v338, %v310
  %v357 = vadd.f32 %v339, %v313
  %v358 = vadd.f32 %v340, %v318
  %v359 = vadd.f32 %v341, %v321
  %v360 = vmax.f32 %v342, 0.0
  %v361 = vmax.f32 %v343, 0.0
  %v362 = vmax.f32 %v344, 0.0
  %v363 = vmax.f32 %v345, 0.0
  %v364 = vmax.f32 %v346, 0.0
  %v365 = vmax.f32 %v347, 0.0
  %v366 = vmax.f32 %v348, 0.0
  %v367 = vmax.f32 %v349, 0.0
  %v368 = vmax.f32 %v350, 0.0
  %v369 = vmax.f32 %v351, 0.0
  %v370 = vmax.f32 %v352, 0.0
  %v371 = vmax.f32 %v353, 0.0
  %v372 = vmax.f32 %v354, 0.0
  %v373 = vmax.f32 %v355, 0.0
  %v374 = vmax.f32 %v356, 0.0
  %v375 = vmax.f32 %v357, 0.0
  %v376 = vmax.f32 %v358, 0.0
  %v377 = vmax.f32 %v359, 0.0
  %v378 = vld [vmem:[%s3] sm:$0x1]
  %v380 = vlaneseq
  %v381 = vshrl.u32 %v380, 7
  %v382 = vsub.s32 0, %v381
  %v383 = vrot.slane %v378, %v382
  %v385 = vmul.f32 %v360, %v383
  %v386 = vmul.f32 %v361, %v383
  %v387 = vmul.f32 %v362, %v383
  %v388 = vmul.f32 %v363, %v383
  %v389 = vmul.f32 %v364, %v383
  %v390 = vmul.f32 %v365, %v383
  %v391 = vmul.f32 %v366, %v383
  %v392 = vmul.f32 %v367, %v383
  %v393 = vmul.f32 %v368, %v383
  %v394 = vmul.f32 %v369, %v383
  %v395 = vmul.f32 %v370, %v383
  %v396 = vmul.f32 %v371, %v383
  %v397 = vmul.f32 %v372, %v383
  %v398 = vmul.f32 %v373, %v383
  %v399 = vmul.f32 %v374, %v383
  %v400 = vmul.f32 %v375, %v383
  %v401 = vmul.f32 %v376, %v383
  %v402 = vmul.f32 %v377, %v383
  %403 = vadd.xlane.f32.xlu0 %v385
  %v404 = vpop.xlane.xlu0 %403
  %405 = vadd.xlane.f32.xlu0 %v386
  %v406 = vpop.xlane.xlu0 %405
  %407 = vadd.xlane.f32.xlu0 %v387
  %v408 = vpop.xlane.xlu0 %407
  %409 = vadd.xlane.f32.xlu0 %v388
  %v410 = vpop.xlane.xlu0 %409
  %411 = vadd.xlane.f32.xlu0 %v389
  %v412 = vpop.xlane.xlu0 %411
  %413 = vadd.xlane.f32.xlu0 %v390
  %v414 = vpop.xlane.xlu0 %413
  %415 = vadd.xlane.f32.xlu0 %v391
  %v416 = vpop.xlane.xlu0 %415
  %417 = vadd.xlane.f32.xlu0 %v392
  %v418 = vpop.xlane.xlu0 %417
  %419 = vadd.xlane.f32.xlu0 %v393
  %v420 = vpop.xlane.xlu0 %419
  %421 = vadd.xlane.f32.xlu0 %v394
  %v422 = vpop.xlane.xlu0 %421
  %423 = vadd.xlane.f32.xlu0 %v395
  %v424 = vpop.xlane.xlu0 %423
  %425 = vadd.xlane.f32.xlu0 %v396
  %v426 = vpop.xlane.xlu0 %425
  %427 = vadd.xlane.f32.xlu0 %v397
  %v428 = vpop.xlane.xlu0 %427
  %429 = vadd.xlane.f32.xlu0 %v398
  %v430 = vpop.xlane.xlu0 %429
  %431 = vadd.xlane.f32.xlu0 %v399
  %v432 = vpop.xlane.xlu0 %431
  %433 = vadd.xlane.f32.xlu0 %v400
  %v434 = vpop.xlane.xlu0 %433
  %435 = vadd.xlane.f32.xlu0 %v401
  %v436 = vpop.xlane.xlu0 %435
  %437 = vadd.xlane.f32.xlu0 %v402
  %v438 = vpop.xlane.xlu0 %437
  %v439 = vtanh.pop %v404
  %v440 = vtanh.pop %v406
  %v441 = vtanh.pop %v408
  %v442 = vtanh.pop %v410
  %v443 = vtanh.pop %v412
  %v444 = vtanh.pop %v414
  %v445 = vtanh.pop %v416
  %v446 = vtanh.pop %v418
  %v447 = vtanh.pop %v420
  %v448 = vtanh.pop %v422
  %v449 = vtanh.pop %v424
  %v450 = vtanh.pop %v426
  %v451 = vtanh.pop %v428
  %v452 = vtanh.pop %v430
  %v453 = vtanh.pop %v432
  %v454 = vtanh.pop %v434
  %v455 = vtanh.pop %v436
  %v456 = vtanh.pop %v438
  %v457 = vmul.f32 %v360, %v439
  %v458 = vmul.f32 %v361, %v440
  %v459 = vmul.f32 %v362, %v441
  %v460 = vmul.f32 %v363, %v442
  %v461 = vmul.f32 %v364, %v443
  %v462 = vmul.f32 %v365, %v444
  %v463 = vmul.f32 %v366, %v445
  %v464 = vmul.f32 %v367, %v446
  %v465 = vmul.f32 %v368, %v447
  %v466 = vmul.f32 %v369, %v448
  %v467 = vmul.f32 %v370, %v449
  %v468 = vmul.f32 %v371, %v450
  %v469 = vmul.f32 %v372, %v451
  %v470 = vmul.f32 %v373, %v452
  %v471 = vmul.f32 %v374, %v453
  %v472 = vmul.f32 %v375, %v454
  %v473 = vmul.f32 %v376, %v455
  %v474 = vmul.f32 %v377, %v456
  %475 = vst [vmem:[%s4] sm:$0xff] %v457
  %476 = vst [vmem:[%s4 + $0x8] sm:$0xff] %v458
  %477 = vst [vmem:[%s4 + $0x10] sm:$0xff] %v459
  %478 = vst [vmem:[%s4 + $0x18] sm:$0xff] %v460
  %479 = vst [vmem:[%s4 + $0x20] sm:$0xff] %v461
  %480 = vst [vmem:[%s4 + $0x28] sm:$0xff] %v462
  %481 = vst [vmem:[%s4 + $0x30] sm:$0xff] %v463
  %482 = vst [vmem:[%s4 + $0x38] sm:$0xff] %v464
  %483 = vst [vmem:[%s4 + $0x40] sm:$0xff] %v465
  %484 = vst [vmem:[%s4 + $0x48] sm:$0xff] %v466
  %485 = vst [vmem:[%s4 + $0x50] sm:$0xff] %v467
  %486 = vst [vmem:[%s4 + $0x58] sm:$0xff] %v468
  %487 = vst [vmem:[%s4 + $0x60] sm:$0xff] %v469
  %488 = vst [vmem:[%s4 + $0x68] sm:$0xff] %v470
  %489 = vst [vmem:[%s4 + $0x70] sm:$0xff] %v471
  %490 = vst [vmem:[%s4 + $0x78] sm:$0xff] %v472
  %491 = vst [vmem:[%s4 + $0x80] sm:$0xff] %v473
  %492 = vst [vmem:[%s4 + $0x88] sm:$0xff] %v474
  %vm493 = vcmask 7168
  %494 = vst.msk [vmem:[%s5] sm:$0xff] %vm493, %v439
  %495 = vst.msk [vmem:[%s5 + $0x8] sm:$0xff] %vm493, %v440
  %496 = vst.msk [vmem:[%s5 + $0x10] sm:$0xff] %vm493, %v441
  %497 = vst.msk [vmem:[%s5 + $0x18] sm:$0xff] %vm493, %v442
  %498 = vst.msk [vmem:[%s5 + $0x20] sm:$0xff] %vm493, %v443
  %499 = vst.msk [vmem:[%s5 + $0x28] sm:$0xff] %vm493, %v444
  %500 = vst.msk [vmem:[%s5 + $0x30] sm:$0xff] %vm493, %v445
  %501 = vst.msk [vmem:[%s5 + $0x38] sm:$0xff] %vm493, %v446
  %502 = vst.msk [vmem:[%s5 + $0x40] sm:$0xff] %vm493, %v447
  %503 = vst.msk [vmem:[%s5 + $0x48] sm:$0xff] %vm493, %v448
  %504 = vst.msk [vmem:[%s5 + $0x50] sm:$0xff] %vm493, %v449
  %505 = vst.msk [vmem:[%s5 + $0x58] sm:$0xff] %vm493, %v450
  %506 = vst.msk [vmem:[%s5 + $0x60] sm:$0xff] %vm493, %v451
  %507 = vst.msk [vmem:[%s5 + $0x68] sm:$0xff] %vm493, %v452
  %508 = vst.msk [vmem:[%s5 + $0x70] sm:$0xff] %vm493, %v453
  %509 = vst.msk [vmem:[%s5 + $0x78] sm:$0xff] %vm493, %v454
  %510 = vst.msk [vmem:[%s5 + $0x80] sm:$0xff] %vm493, %v455
  %511 = vst.msk [vmem:[%s5 + $0x88] sm:$0xff] %vm493, %v456
  // Predicated region
  $region18: #{net_forward.2} parent=0 // pred_check
    _
  $region19: #{net_forward.2} parent=0 // pred_check_branch
    %513 = sbr.rel (0) target = $region21
  $region20: #{net_forward.2} parent=0 // pred_region
    _
  $region21: #{net_forward.2} parent=0 // pred_fallthru
    _
  // Predicated region
  $region22: #{net_forward.2} parent=0 // pred_check
    _
  $region23: #{net_forward.2} parent=0 // pred_check_branch
    %515 = sbr.rel (0) target = $region25
  $region24: #{net_forward.2} parent=0 // pred_region
    _
  $region25: #{net_forward.2} parent=0 // pred_fallthru
    _
  // Predicated region
  $region26: #{net_forward.2} parent=0 // pred_check
    _
  $region27: #{net_forward.2} parent=0 // pred_check_branch
    %517 = sbr.rel (0) target = $region29
  $region28: #{net_forward.2} parent=0 // pred_region
    _
  $region29: #{net_forward.2} parent=0 // pred_fallthru
    _
  // Predicated region
  $region30: #{net_forward.2} parent=0 // pred_check
    _
  $region31: #{net_forward.2} parent=0 // pred_check_branch
    %519 = sbr.rel (0) target = $region33
  $region32: #{net_forward.2} parent=0 // pred_region
    _
  $region33: #{net_forward.2} parent=0 // pred_fallthru
    _

// kernel: net_forward.3
$region0: #{net_forward.3}
  #allocation0 [shape = 'u32[]', space=smem, size = 0x4, offset = 0x4, fixed_abs, tag = 'smem constant byte address 0x4 - core index']
  #allocation1 [shape = 'u32[144,128]{1,0:T(1,128)}', space=vmem, size = 0x12000, scoped, tag = 'internal scratch']
  %s0 = inlined_call_operand.vmem [shape: f32[8,144], index: 0, kind: input, shape index: {}]
  %s1 = inlined_call_operand.vmem [shape: f32[8,144,1], index: 1, kind: input, shape index: {}]
  %s2 = inlined_call_operand.vmem [shape: f32[144,128], index: 2, kind: input, shape index: {}]
  %s3 = inlined_call_operand.vmem [shape: f32[256,128], index: 3, kind: input, shape index: {}]
  %s4 = inlined_call_operand.vmem [shape: f32[1,128], index: 4, kind: input, shape index: {}]
  %s5 = inlined_call_operand.vmem [shape: f32[128,128], index: 5, kind: input, shape index: {}]
  %s6 = inlined_call_operand.vmem [shape: f32[1,128], index: 6, kind: input, shape index: {}]
  %s7 = inlined_call_operand.vmem [shape: f32[128,128], index: 7, kind: input, shape index: {}]
  %s8 = inlined_call_operand.vmem [shape: f32[1,128], index: 8, kind: input, shape index: {}]
  %s9 = inlined_call_operand.vmem [shape: f32[8,128], index: 9, kind: output, shape index: {}]
  %s10 = sld [smem:[#allocation0]]
  $region46: #{net_forward.3} parent=0
    _
  %s12 = ssub.s32 1, %s10
  %s13 = scalar_select 0, %s12, %s10
  // Predicated region
  $region2: #{net_forward.3} parent=0 // pred_check
    _
  $region3: #{net_forward.3} parent=0 // pred_check_branch
    %15 = sbr.rel (0) target = $region5
  $region4: #{net_forward.3} parent=0 // pred_region
    _
  $region5: #{net_forward.3} parent=0 // pred_fallthru
    _
  // Predicated region
  $region6: #{net_forward.3} parent=0 // pred_check
    _
  $region7: #{net_forward.3} parent=0 // pred_check_branch
    %17 = sbr.rel (0) target = $region9
  $region8: #{net_forward.3} parent=0 // pred_region
    _
  $region9: #{net_forward.3} parent=0 // pred_fallthru
    _
  // Predicated region
  $region10: #{net_forward.3} parent=0 // pred_check
    _
  $region11: #{net_forward.3} parent=0 // pred_check_branch
    %19 = sbr.rel (0) target = $region13
  $region12: #{net_forward.3} parent=0 // pred_region
    _
  $region13: #{net_forward.3} parent=0 // pred_fallthru
    _
  // Predicated region
  $region14: #{net_forward.3} parent=0 // pred_check
    _
  $region15: #{net_forward.3} parent=0 // pred_check_branch
    %21 = sbr.rel (0) target = $region17
  $region16: #{net_forward.3} parent=0 // pred_region
    _
  $region17: #{net_forward.3} parent=0 // pred_fallthru
    _
  // Predicated region
  $region18: #{net_forward.3} parent=0 // pred_check
    _
  $region19: #{net_forward.3} parent=0 // pred_check_branch
    %23 = sbr.rel (0) target = $region21
  $region20: #{net_forward.3} parent=0 // pred_region
    _
  $region21: #{net_forward.3} parent=0 // pred_fallthru
    _
  // Predicated region
  $region22: #{net_forward.3} parent=0 // pred_check
    _
  $region23: #{net_forward.3} parent=0 // pred_check_branch
    %25 = sbr.rel (0) target = $region25
  $region24: #{net_forward.3} parent=0 // pred_region
    _
  $region25: #{net_forward.3} parent=0 // pred_fallthru
    _
  // Predicated region
  $region26: #{net_forward.3} parent=0 // pred_check
    _
  $region27: #{net_forward.3} parent=0 // pred_check_branch
    %27 = sbr.rel (0) target = $region29
  $region28: #{net_forward.3} parent=0 // pred_region
    _
  $region29: #{net_forward.3} parent=0 // pred_fallthru
    _
  // Predicated region
  $region30: #{net_forward.3} parent=0 // pred_check
    _
  $region31: #{net_forward.3} parent=0 // pred_check_branch
    %29 = sbr.rel (0) target = $region33
  $region32: #{net_forward.3} parent=0 // pred_region
    _
  $region33: #{net_forward.3} parent=0 // pred_fallthru
    _
  // Predicated region
  $region34: #{net_forward.3} parent=0 // pred_check
    _
  $region35: #{net_forward.3} parent=0 // pred_check_branch
    %31 = sbr.rel (0) target = $region37
  $region36: #{net_forward.3} parent=0 // pred_region
    _
  $region37: #{net_forward.3} parent=0 // pred_fallthru
    _
  %v32 = vld [vmem:[%s0] sm:$0xff]
  %v33 = vld [vmem:[%s0 + $0x8] sm:$0xff]
  %v34 = vld [vmem:[%s2] sm:$0xff]
  %v35 = vld [vmem:[%s2 + $0x8] sm:$0xff]
  %v36 = vld [vmem:[%s2 + $0x10] sm:$0xff]
  %v37 = vld [vmem:[%s2 + $0x18] sm:$0xff]
  %v38 = vld [vmem:[%s2 + $0x20] sm:$0xff]
  %v39 = vld [vmem:[%s2 + $0x28] sm:$0xff]
  %v40 = vld [vmem:[%s2 + $0x30] sm:$0xff]
  %v41 = vld [vmem:[%s2 + $0x38] sm:$0xff]
  %v42 = vld [vmem:[%s2 + $0x40] sm:$0xff]
  %v43 = vld [vmem:[%s2 + $0x48] sm:$0xff]
  %v44 = vld [vmem:[%s2 + $0x50] sm:$0xff]
  %v45 = vld [vmem:[%s2 + $0x58] sm:$0xff]
  %v46 = vld [vmem:[%s2 + $0x60] sm:$0xff]
  %v47 = vld [vmem:[%s2 + $0x68] sm:$0xff]
  %v48 = vld [vmem:[%s2 + $0x70] sm:$0xff]
  %v49 = vld [vmem:[%s2 + $0x78] sm:$0xff]
  %v50 = vld [vmem:[%s2 + $0x80] sm:$0xff]
  %v51 = vld [vmem:[%s2 + $0x88] sm:$0xff]
  %vm52 = vcmask 130048
  %v53 = vsel %vm52, %v33, 0.0
  %v54 = vadd.f32 %v32, %v53
  %55 = vadd.xlane.f32.xlu0 %v54
  %v56 = vpop.xlane.xlu0 %55
  %v58 = vsel %vm52, %v33, 0
  %60 = vmatprep.subr.mxu0 0.0
  %61 = vmatpush1.msra.mxu0 %v49
  %62 = vmatprep.subr.mxu0 0.0
  %63 = vmatpush1.msra.mxu0 %v48
  %64 = vmatprep.subr.mxu0 0.0
  %65 = vmatpush1.msra.mxu0 %v47
  %66 = vmatprep.subr.mxu0 0.0
  %67 = vmatpush1.msra.mxu0 %v46
  %68 = vmatprep.subr.mxu0 0.0
  %69 = vmatpush1.msra.mxu0 %v45
  %70 = vmatprep.subr.mxu0 0.0
  %71 = vmatpush1.msra.mxu0 %v44
  %72 = vmatprep.subr.mxu0 0.0
  %73 = vmatpush1.msra.mxu0 %v43
  %74 = vmatprep.subr.mxu0 0.0
  %75 = vmatpush1.msra.mxu0 %v42
  %76 = vmatprep.subr.mxu0 0.0
  %77 = vmatpush1.msra.mxu0 %v41
  %78 = vmatprep.subr.mxu0 0.0
  %79 = vmatpush1.msra.mxu0 %v40
  %80 = vmatprep.subr.mxu0 0.0
  %81 = vmatpush1.msra.mxu0 %v39
  %82 = vmatprep.subr.mxu0 0.0
  %83 = vmatpush1.msra.mxu0 %v38
  %84 = vmatprep.subr.mxu0 0.0
  %85 = vmatpush1.msra.mxu0 %v37
  %86 = vmatprep.subr.mxu0 0.0
  %87 = vmatpush1.msra.mxu0 %v36
  %88 = vmatprep.subr.mxu0 0.0
  %89 = vmatpush1.msra.mxu0 %v35
  %90 = vmatprep.subr.mxu0 0.0
  %91 = vmatpush1.msra.mxu0 %v34
  %92 = vmatprep.subr.mxu0 0.0
  %93 = vmatpush2.msra.mxu0 0.0
  %94 = vmatprep.subr.mxu0 0.0
  %95 = vmatpush2.msra.mxu0 0.0
  %96 = vmatprep.subr.mxu0 0.0
  %97 = vmatpush2.msra.mxu0 0.0
  %98 = vmatprep.subr.mxu0 0.0
  %99 = vmatpush2.msra.mxu0 0.0
  %100 = vmatprep.subr.mxu0 0.0
  %101 = vmatpush2.msra.mxu0 0.0
  %102 = vmatprep.subr.mxu0 0.0
  %103 = vmatpush2.msra.mxu0 0.0
  %104 = vmatprep.subr.mxu0 0.0
  %105 = vmatpush2.msra.mxu0 0.0
  %106 = vmatprep.subr.mxu0 0.0
  %107 = vmatpush2.msra.mxu0 0.0
  %108 = vmatprep.subr.mxu0 0.0
  %109 = vmatpush2.msra.mxu0 0.0
  %110 = vmatprep.subr.mxu0 0.0
  %111 = vmatpush2.msra.mxu0 0.0
  %112 = vmatprep.subr.mxu0 0.0
  %113 = vmatpush2.msra.mxu0 0.0
  %114 = vmatprep.subr.mxu0 0.0
  %115 = vmatpush2.msra.mxu0 0.0
  %116 = vmatprep.subr.mxu0 0.0
  %117 = vmatpush2.msra.mxu0 0.0
  %118 = vmatprep.subr.mxu0 0.0
  %119 = vmatpush2.msra.mxu0 0.0
  %120 = vmatprep.subr.mxu0 0.0
  %121 = vmatpush2.msra.mxu0 %v51
  %122 = vmatprep.subr.mxu0 0.0
  %123 = vmatpush2.msra.mxu0 %v50
  %124 = vmatprep.mubr.f32.mxu0 %v58
  %125 = vmatmul.mubr.f32.gmra.mxu0 %v32
  %v126 = vpop.f32.mrf.mxu0
  %v127 = vadd.f32 0.0, %v126
  %v128 = vpop.f32.mrf.mxu0
  %129 = vdwg.mxu0
  %v130 = vmax.f32 %v56, 1.0
  %v131 = vrcp.pop %v130
  %v132 = vmul.f32 %v127, %v131
  %v133 = vld [vmem:[%s1] sm:$0xff]
  %v134 = vld [vmem:[%s1 + $0x8] sm:$0xff]
  %v135 = vld [vmem:[%s1 + $0x10] sm:$0xff]
  %v136 = vld [vmem:[%s1 + $0x18] sm:$0xff]
  %v137 = vld [vmem:[%s1 + $0x20] sm:$0xff]
  %v138 = vld [vmem:[%s1 + $0x28] sm:$0xff]
  %v139 = vld [vmem:[%s1 + $0x30] sm:$0xff]
  %v140 = vld [vmem:[%s1 + $0x38] sm:$0xff]
  %v141 = vld [vmem:[%s1 + $0x40] sm:$0xff]
  %v142 = vld [vmem:[%s1 + $0x48] sm:$0xff]
  %v143 = vld [vmem:[%s1 + $0x50] sm:$0xff]
  %v144 = vld [vmem:[%s1 + $0x58] sm:$0xff]
  %v145 = vld [vmem:[%s1 + $0x60] sm:$0xff]
  %v146 = vld [vmem:[%s1 + $0x68] sm:$0xff]
  %v147 = vld [vmem:[%s1 + $0x70] sm:$0xff]
  %v148 = vld [vmem:[%s1 + $0x78] sm:$0xff]
  %v149 = vld [vmem:[%s1 + $0x80] sm:$0xff]
  %v150 = vld [vmem:[%s1 + $0x88] sm:$0xff]
  %v151 = vld [vmem:[%s1 + $0x90] sm:$0xff]
  %v152 = vld [vmem:[%s1 + $0x98] sm:$0xff]
  %v153 = vld [vmem:[%s1 + $0xa0] sm:$0xff]
  %v154 = vld [vmem:[%s1 + $0xa8] sm:$0xff]
  %v155 = vld [vmem:[%s1 + $0xb0] sm:$0xff]
  %v156 = vld [vmem:[%s1 + $0xb8] sm:$0xff]
  %v157 = vld [vmem:[%s1 + $0xc0] sm:$0xff]
  %v158 = vld [vmem:[%s1 + $0xc8] sm:$0xff]
  %v159 = vld [vmem:[%s1 + $0xd0] sm:$0xff]
  %v160 = vld [vmem:[%s1 + $0xd8] sm:$0xff]
  %v161 = vld [vmem:[%s1 + $0xe0] sm:$0xff]
  %v162 = vld [vmem:[%s1 + $0xe8] sm:$0xff]
  %v163 = vld [vmem:[%s1 + $0xf0] sm:$0xff]
  %v164 = vld [vmem:[%s1 + $0xf8] sm:$0xff]
  %v165 = vld [vmem:[%s1 + $0x100] sm:$0xff]
  %v166 = vld [vmem:[%s1 + $0x108] sm:$0xff]
  %v167 = vld [vmem:[%s1 + $0x110] sm:$0xff]
  %v168 = vld [vmem:[%s1 + $0x118] sm:$0xff]
  %v169 = vld [vmem:[%s1 + $0x120] sm:$0xff]
  %v170 = vld [vmem:[%s1 + $0x128] sm:$0xff]
  %v171 = vld [vmem:[%s1 + $0x130] sm:$0xff]
  %v172 = vld [vmem:[%s1 + $0x138] sm:$0xff]
  %v173 = vld [vmem:[%s1 + $0x140] sm:$0xff]
  %v174 = vld [vmem:[%s1 + $0x148] sm:$0xff]
  %v175 = vld [vmem:[%s1 + $0x150] sm:$0xff]
  %v176 = vld [vmem:[%s1 + $0x158] sm:$0xff]
  %v177 = vld [vmem:[%s1 + $0x160] sm:$0xff]
  %v178 = vld [vmem:[%s1 + $0x168] sm:$0xff]
  %v179 = vld [vmem:[%s1 + $0x170] sm:$0xff]
  %v180 = vld [vmem:[%s1 + $0x178] sm:$0xff]
  %v181 = vld [vmem:[%s1 + $0x180] sm:$0xff]
  %v182 = vld [vmem:[%s1 + $0x188] sm:$0xff]
  %v183 = vld [vmem:[%s1 + $0x190] sm:$0xff]
  %v184 = vld [vmem:[%s1 + $0x198] sm:$0xff]
  %v185 = vld [vmem:[%s1 + $0x1a0] sm:$0xff]
  %v186 = vld [vmem:[%s1 + $0x1a8] sm:$0xff]
  %v187 = vld [vmem:[%s1 + $0x1b0] sm:$0xff]
  %v188 = vld [vmem:[%s1 + $0x1b8] sm:$0xff]
  %v189 = vld [vmem:[%s1 + $0x1c0] sm:$0xff]
  %v190 = vld [vmem:[%s1 + $0x1c8] sm:$0xff]
  %v191 = vld [vmem:[%s1 + $0x1d0] sm:$0xff]
  %v192 = vld [vmem:[%s1 + $0x1d8] sm:$0xff]
  %v193 = vld [vmem:[%s1 + $0x1e0] sm:$0xff]
  %v194 = vld [vmem:[%s1 + $0x1e8] sm:$0xff]
  %v195 = vld [vmem:[%s1 + $0x1f0] sm:$0xff]
  %v196 = vld [vmem:[%s1 + $0x1f8] sm:$0xff]
  %v197 = vld [vmem:[%s1 + $0x200] sm:$0xff]
  %v198 = vld [vmem:[%s1 + $0x208] sm:$0xff]
  %v199 = vld [vmem:[%s1 + $0x210] sm:$0xff]
  %v200 = vld [vmem:[%s1 + $0x218] sm:$0xff]
  %v201 = vld [vmem:[%s1 + $0x220] sm:$0xff]
  %v202 = vld [vmem:[%s1 + $0x228] sm:$0xff]
  %v203 = vld [vmem:[%s1 + $0x230] sm:$0xff]
  %v204 = vld [vmem:[%s1 + $0x238] sm:$0xff]
  %v205 = vld [vmem:[%s1 + $0x240] sm:$0xff]
  %v206 = vld [vmem:[%s1 + $0x248] sm:$0xff]
  %v207 = vld [vmem:[%s1 + $0x250] sm:$0xff]
  %v208 = vld [vmem:[%s1 + $0x258] sm:$0xff]
  %v209 = vld [vmem:[%s1 + $0x260] sm:$0xff]
  %v210 = vld [vmem:[%s1 + $0x268] sm:$0xff]
  %v211 = vld [vmem:[%s1 + $0x270] sm:$0xff]
  %v212 = vld [vmem:[%s1 + $0x278] sm:$0xff]
  %v213 = vld [vmem:[%s1 + $0x280] sm:$0xff]
  %v214 = vld [vmem:[%s1 + $0x288] sm:$0xff]
  %v215 = vld [vmem:[%s1 + $0x290] sm:$0xff]
  %v216 = vld [vmem:[%s1 + $0x298] sm:$0xff]
  %v217 = vld [vmem:[%s1 + $0x2a0] sm:$0xff]
  %v218 = vld [vmem:[%s1 + $0x2a8] sm:$0xff]
  %v219 = vld [vmem:[%s1 + $0x2b0] sm:$0xff]
  %v220 = vld [vmem:[%s1 + $0x2b8] sm:$0xff]
  %v221 = vld [vmem:[%s1 + $0x2c0] sm:$0xff]
  %v222 = vld [vmem:[%s1 + $0x2c8] sm:$0xff]
  %v223 = vld [vmem:[%s1 + $0x2d0] sm:$0xff]
  %v224 = vld [vmem:[%s1 + $0x2d8] sm:$0xff]
  %v225 = vld [vmem:[%s1 + $0x2e0] sm:$0xff]
  %v226 = vld [vmem:[%s1 + $0x2e8] sm:$0xff]
  %v227 = vld [vmem:[%s1 + $0x2f0] sm:$0xff]
  %v228 = vld [vmem:[%s1 + $0x2f8] sm:$0xff]
  %v229 = vld [vmem:[%s1 + $0x300] sm:$0xff]
  %v230 = vld [vmem:[%s1 + $0x308] sm:$0xff]
  %v231 = vld [vmem:[%s1 + $0x310] sm:$0xff]
  %v232 = vld [vmem:[%s1 + $0x318] sm:$0xff]
  %v233 = vld [vmem:[%s1 + $0x320] sm:$0xff]
  %v234 = vld [vmem:[%s1 + $0x328] sm:$0xff]
  %v235 = vld [vmem:[%s1 + $0x330] sm:$0xff]
  %v236 = vld [vmem:[%s1 + $0x338] sm:$0xff]
  %v237 = vld [vmem:[%s1 + $0x340] sm:$0xff]
  %v238 = vld [vmem:[%s1 + $0x348] sm:$0xff]
  %v239 = vld [vmem:[%s1 + $0x350] sm:$0xff]
  %v240 = vld [vmem:[%s1 + $0x358] sm:$0xff]
  %v241 = vld [vmem:[%s1 + $0x360] sm:$0xff]
  %v242 = vld [vmem:[%s1 + $0x368] sm:$0xff]
  %v243 = vld [vmem:[%s1 + $0x370] sm:$0xff]
  %v244 = vld [vmem:[%s1 + $0x378] sm:$0xff]
  %v245 = vld [vmem:[%s1 + $0x380] sm:$0xff]
  %v246 = vld [vmem:[%s1 + $0x388] sm:$0xff]
  %v247 = vld [vmem:[%s1 + $0x390] sm:$0xff]
  %v248 = vld [vmem:[%s1 + $0x398] sm:$0xff]
  %v249 = vld [vmem:[%s1 + $0x3a0] sm:$0xff]
  %v250 = vld [vmem:[%s1 + $0x3a8] sm:$0xff]
  %v251 = vld [vmem:[%s1 + $0x3b0] sm:$0xff]
  %v252 = vld [vmem:[%s1 + $0x3b8] sm:$0xff]
  %v253 = vld [vmem:[%s1 + $0x3c0] sm:$0xff]
  %v254 = vld [vmem:[%s1 + $0x3c8] sm:$0xff]
  %v255 = vld [vmem:[%s1 + $0x3d0] sm:$0xff]
  %v256 = vld [vmem:[%s1 + $0x3d8] sm:$0xff]
  %v257 = vld [vmem:[%s1 + $0x3e0] sm:$0xff]
  %v258 = vld [vmem:[%s1 + $0x3e8] sm:$0xff]
  %v259 = vld [vmem:[%s1 + $0x3f0] sm:$0xff]
  %v260 = vld [vmem:[%s1 + $0x3f8] sm:$0xff]
  %v261 = vld [vmem:[%s1 + $0x400] sm:$0xff]
  %v262 = vld [vmem:[%s1 + $0x408] sm:$0xff]
  %v263 = vld [vmem:[%s1 + $0x410] sm:$0xff]
  %v264 = vld [vmem:[%s1 + $0x418] sm:$0xff]
  %v265 = vld [vmem:[%s1 + $0x420] sm:$0xff]
  %v266 = vld [vmem:[%s1 + $0x428] sm:$0xff]
  %v267 = vld [vmem:[%s1 + $0x430] sm:$0xff]
  %v268 = vld [vmem:[%s1 + $0x438] sm:$0xff]
  %v269 = vld [vmem:[%s1 + $0x440] sm:$0xff]
  %v270 = vld [vmem:[%s1 + $0x448] sm:$0xff]
  %v271 = vld [vmem:[%s1 + $0x450] sm:$0xff]
  %v272 = vld [vmem:[%s1 + $0x458] sm:$0xff]
  %v273 = vld [vmem:[%s1 + $0x460] sm:$0xff]
  %v274 = vld [vmem:[%s1 + $0x468] sm:$0xff]
  %v275 = vld [vmem:[%s1 + $0x470] sm:$0xff]
  %v276 = vld [vmem:[%s1 + $0x478] sm:$0xff]
  %vm277 = vcmp.gt.f32.partialorder %v133, 0.0
  %vm278 = vcmp.gt.f32.partialorder %v134, 0.0
  %vm279 = vcmp.gt.f32.partialorder %v135, 0.0
  %vm280 = vcmp.gt.f32.partialorder %v136, 0.0
  %vm281 = vcmp.gt.f32.partialorder %v137, 0.0
  %vm282 = vcmp.gt.f32.partialorder %v138, 0.0
  %vm283 = vcmp.gt.f32.partialorder %v139, 0.0
  %vm284 = vcmp.gt.f32.partialorder %v140, 0.0
  %vm285 = vcmp.gt.f32.partialorder %v141, 0.0
  %vm286 = vcmp.gt.f32.partialorder %v142, 0.0
  %vm287 = vcmp.gt.f32.partialorder %v143, 0.0
  %vm288 = vcmp.gt.f32.partialorder %v144, 0.0
  %vm289 = vcmp.gt.f32.partialorder %v145, 0.0
  %vm290 = vcmp.gt.f32.partialorder %v146, 0.0
  %vm291 = vcmp.gt.f32.partialorder %v147, 0.0
  %vm292 = vcmp.gt.f32.partialorder %v148, 0.0
  %vm293 = vcmp.gt.f32.partialorder %v149, 0.0
  %vm294 = vcmp.gt.f32.partialorder %v150, 0.0
  %v295 = vsel %vm277, 1, 0
  %v296 = vsel %vm278, 1, 0
  %v297 = vsel %vm279, 1, 0
  %v298 = vsel %vm280, 1, 0
  %v299 = vsel %vm281, 1, 0
  %v300 = vsel %vm282, 1, 0
  %v301 = vsel %vm283, 1, 0
  %v302 = vsel %vm284, 1, 0
  %v303 = vsel %vm285, 1, 0
  %v304 = vsel %vm286, 1, 0
  %v305 = vsel %vm287, 1, 0
  %v306 = vsel %vm288, 1, 0
  %v307 = vsel %vm289, 1, 0
  %v308 = vsel %vm290, 1, 0
  %v309 = vsel %vm291, 1, 0
  %v310 = vsel %vm292, 1, 0
  %v311 = vsel %vm293, 1, 0
  %v312 = vsel %vm294, 1, 0
  %313 = vset.pattern.permute.xlu0 0
  %314 = vperm.xlu0 %313, %v295
  %v315 = vpop.permute.xlu0 %314
  %316 = vset.pattern.permute.xlu0 0
  %317 = vperm.xlu0 %316, %v296
  %v318 = vpop.permute.xlu0 %317
  %319 = vset.pattern.permute.xlu0 0
  %320 = vperm.xlu0 %319, %v297
  %v321 = vpop.permute.xlu0 %320
  %322 = vset.pattern.permute.xlu0 0
  %323 = vperm.xlu0 %322, %v298
  %v324 = vpop.permute.xlu0 %323
  %325 = vset.pattern.permute.xlu0 0
  %326 = vperm.xlu0 %325, %v299
  %v327 = vpop.permute.xlu0 %326
  %328 = vset.pattern.permute.xlu0 0
  %329 = vperm.xlu0 %328, %v300
  %v330 = vpop.permute.xlu0 %329
  %331 = vset.pattern.permute.xlu0 0
  %332 = vperm.xlu0 %331, %v301
  %v333 = vpop.permute.xlu0 %332
  %334 = vset.pattern.permute.xlu0 0
  %335 = vperm.xlu0 %334, %v302
  %v336 = vpop.permute.xlu0 %335
  %337 = vset.pattern.permute.xlu0 0
  %338 = vperm.xlu0 %337, %v303
  %v339 = vpop.permute.xlu0 %338
  %340 = vset.pattern.permute.xlu0 0
  %341 = vperm.xlu0 %340, %v304
  %v342 = vpop.permute.xlu0 %341
  %343 = vset.pattern.permute.xlu0 0
  %344 = vperm.xlu0 %343, %v305
  %v345 = vpop.permute.xlu0 %344
  %346 = vset.pattern.permute.xlu0 0
  %347 = vperm.xlu0 %346, %v306
  %v348 = vpop.permute.xlu0 %347
  %349 = vset.pattern.permute.xlu0 0
  %350 = vperm.xlu0 %349, %v307
  %v351 = vpop.permute.xlu0 %350
  %352 = vset.pattern.permute.xlu0 0
  %353 = vperm.xlu0 %352, %v308
  %v354 = vpop.permute.xlu0 %353
  %355 = vset.pattern.permute.xlu0 0
  %356 = vperm.xlu0 %355, %v309
  %v357 = vpop.permute.xlu0 %356
  %358 = vset.pattern.permute.xlu0 0
  %359 = vperm.xlu0 %358, %v310
  %v360 = vpop.permute.xlu0 %359
  %361 = vset.pattern.permute.xlu0 0
  %362 = vperm.xlu0 %361, %v311
  %v363 = vpop.permute.xlu0 %362
  %364 = vset.pattern.permute.xlu0 0
  %365 = vperm.xlu0 %364, %v312
  %v366 = vpop.permute.xlu0 %365
  %vm367 = vcmp.eq.s32.totalorder %v315, 1
  %vm368 = vcmp.eq.s32.totalorder %v318, 1
  %vm369 = vcmp.eq.s32.totalorder %v321, 1
  %vm370 = vcmp.eq.s32.totalorder %v324, 1
  %vm371 = vcmp.eq.s32.totalorder %v327, 1
  %vm372 = vcmp.eq.s32.totalorder %v330, 1
  %vm373 = vcmp.eq.s32.totalorder %v333, 1
  %vm374 = vcmp.eq.s32.totalorder %v336, 1
  %vm375 = vcmp.eq.s32.totalorder %v339, 1
  %vm376 = vcmp.eq.s32.totalorder %v342, 1
  %vm377 = vcmp.eq.s32.totalorder %v345, 1
  %vm378 = vcmp.eq.s32.totalorder %v348, 1
  %vm379 = vcmp.eq.s32.totalorder %v351, 1
  %vm380 = vcmp.eq.s32.totalorder %v354, 1
  %vm381 = vcmp.eq.s32.totalorder %v357, 1
  %vm382 = vcmp.eq.s32.totalorder %v360, 1
  %vm383 = vcmp.eq.s32.totalorder %v363, 1
  %vm384 = vcmp.eq.s32.totalorder %v366, 1
  %v385 = vsel %vm367, %v34, -1e+30
  %v386 = vsel %vm368, %v35, -1e+30
  %v387 = vsel %vm369, %v36, -1e+30
  %v388 = vsel %vm370, %v37, -1e+30
  %v389 = vsel %vm371, %v38, -1e+30
  %v390 = vsel %vm372, %v39, -1e+30
  %v391 = vsel %vm373, %v40, -1e+30
  %v392 = vsel %vm374, %v41, -1e+30
  %v393 = vsel %vm375, %v42, -1e+30
  %v394 = vsel %vm376, %v43, -1e+30
  %v395 = vsel %vm377, %v44, -1e+30
  %v396 = vsel %vm378, %v45, -1e+30
  %v397 = vsel %vm379, %v46, -1e+30
  %v398 = vsel %vm380, %v47, -1e+30
  %v399 = vsel %vm381, %v48, -1e+30
  %v400 = vsel %vm382, %v49, -1e+30
  %v401 = vsel %vm383, %v50, -1e+30
  %v402 = vsel %vm384, %v51, -1e+30
  %v403 = vmax.f32 %v385, %v389
  %v404 = vmax.f32 %v386, %v390
  %v405 = vmax.f32 %v387, %v391
  %v406 = vmax.f32 %v388, %v392
  %v407 = vmax.f32 %v403, %v393
  %v408 = vmax.f32 %v404, %v394
  %v409 = vmax.f32 %v405, %v395
  %v410 = vmax.f32 %v406, %v396
  %v411 = vmax.f32 %v407, %v397
  %v412 = vmax.f32 %v408, %v398
  %v413 = vmax.f32 %v409, %v399
  %v414 = vmax.f32 %v410, %v400
  %v415 = vmax.f32 %v411, %v401
  %v416 = vmax.f32 %v412, %v402
  %v417 = vmax.f32 %v415, %v416
  %v418 = vmax.f32 %v413, %v414
  %v419 = vmax.f32 %v417, %v418
  %v420 = vrot.slane %v419, 4
  %v421 = vmax.f32 %v419, %v420
  %v422 = vrot.slane %v421, 2
  %v423 = vmax.f32 %v421, %v422
  %v424 = vrot.slane %v423, 1
  %v425 = vmax.f32 %v423, %v424
  %vm426 = vcmp.gt.f32.partialorder %v151, 0.0
  %vm427 = vcmp.gt.f32.partialorder %v152, 0.0
  %vm428 = vcmp.gt.f32.partialorder %v153, 0.0
  %vm429 = vcmp.gt.f32.partialorder %v154, 0.0
  %vm430 = vcmp.gt.f32.partialorder %v155, 0.0
  %vm431 = vcmp.gt.f32.partialorder %v156, 0.0
  %vm432 = vcmp.gt.f32.partialorder %v157, 0.0
  %vm433 = vcmp.gt.f32.partialorder %v158, 0.0
  %vm434 = vcmp.gt.f32.partialorder %v159, 0.0
  %vm435 = vcmp.gt.f32.partialorder %v160, 0.0
  %vm436 = vcmp.gt.f32.partialorder %v161, 0.0
  %vm437 = vcmp.gt.f32.partialorder %v162, 0.0
  %vm438 = vcmp.gt.f32.partialorder %v163, 0.0
  %vm439 = vcmp.gt.f32.partialorder %v164, 0.0
  %vm440 = vcmp.gt.f32.partialorder %v165, 0.0
  %vm441 = vcmp.gt.f32.partialorder %v166, 0.0
  %vm442 = vcmp.gt.f32.partialorder %v167, 0.0
  %vm443 = vcmp.gt.f32.partialorder %v168, 0.0
  %v444 = vsel %vm426, 1, 0
  %v445 = vsel %vm427, 1, 0
  %v446 = vsel %vm428, 1, 0
  %v447 = vsel %vm429, 1, 0
  %v448 = vsel %vm430, 1, 0
  %v449 = vsel %vm431, 1, 0
  %v450 = vsel %vm432, 1, 0
  %v451 = vsel %vm433, 1, 0
  %v452 = vsel %vm434, 1, 0
  %v453 = vsel %vm435, 1, 0
  %v454 = vsel %vm436, 1, 0
  %v455 = vsel %vm437, 1, 0
  %v456 = vsel %vm438, 1, 0
  %v457 = vsel %vm439, 1, 0
  %v458 = vsel %vm440, 1, 0
  %v459 = vsel %vm441, 1, 0
  %v460 = vsel %vm442, 1, 0
  %v461 = vsel %vm443, 1, 0
  %462 = vset.pattern.permute.xlu0 0
  %463 = vperm.xlu0 %462, %v444
  %v464 = vpop.permute.xlu0 %463
  %465 = vset.pattern.permute.xlu0 0
  %466 = vperm.xlu0 %465, %v445
  %v467 = vpop.permute.xlu0 %466
  %468 = vset.pattern.permute.xlu0 0
  %469 = vperm.xlu0 %468, %v446
  %v470 = vpop.permute.xlu0 %469
  %471 = vset.pattern.permute.xlu0 0
  %472 = vperm.xlu0 %471, %v447
  %v473 = vpop.permute.xlu0 %472
  %474 = vset.pattern.permute.xlu0 0
  %475 = vperm.xlu0 %474, %v448
  %v476 = vpop.permute.xlu0 %475
  %477 = vset.pattern.permute.xlu0 0
  %478 = vperm.xlu0 %477, %v449
  %v479 = vpop.permute.xlu0 %478
  %480 = vset.pattern.permute.xlu0 0
  %481 = vperm.xlu0 %480, %v450
  %v482 = vpop.permute.xlu0 %481
  %483 = vset.pattern.permute.xlu0 0
  %484 = vperm.xlu0 %483, %v451
  %v485 = vpop.permute.xlu0 %484
  %486 = vset.pattern.permute.xlu0 0
  %487 = vperm.xlu0 %486, %v452
  %v488 = vpop.permute.xlu0 %487
  %489 = vset.pattern.permute.xlu0 0
  %490 = vperm.xlu0 %489, %v453
  %v491 = vpop.permute.xlu0 %490
  %492 = vset.pattern.permute.xlu0 0
  %493 = vperm.xlu0 %492, %v454
  %v494 = vpop.permute.xlu0 %493
  %495 = vset.pattern.permute.xlu0 0
  %496 = vperm.xlu0 %495, %v455
  %v497 = vpop.permute.xlu0 %496
  %498 = vset.pattern.permute.xlu0 0
  %499 = vperm.xlu0 %498, %v456
  %v500 = vpop.permute.xlu0 %499
  %501 = vset.pattern.permute.xlu0 0
  %502 = vperm.xlu0 %501, %v457
  %v503 = vpop.permute.xlu0 %502
  %504 = vset.pattern.permute.xlu0 0
  %505 = vperm.xlu0 %504, %v458
  %v506 = vpop.permute.xlu0 %505
  %507 = vset.pattern.permute.xlu0 0
  %508 = vperm.xlu0 %507, %v459
  %v509 = vpop.permute.xlu0 %508
  %510 = vset.pattern.permute.xlu0 0
  %511 = vperm.xlu0 %510, %v460
  %v512 = vpop.permute.xlu0 %511
  %513 = vset.pattern.permute.xlu0 0
  %514 = vperm.xlu0 %513, %v461
  %v515 = vpop.permute.xlu0 %514
  %vm516 = vcmp.eq.s32.totalorder %v464, 1
  %vm517 = vcmp.eq.s32.totalorder %v467, 1
  %vm518 = vcmp.eq.s32.totalorder %v470, 1
  %vm519 = vcmp.eq.s32.totalorder %v473, 1
  %vm520 = vcmp.eq.s32.totalorder %v476, 1
  %vm521 = vcmp.eq.s32.totalorder %v479, 1
  %vm522 = vcmp.eq.s32.totalorder %v482, 1
  %vm523 = vcmp.eq.s32.totalorder %v485, 1
  %vm524 = vcmp.eq.s32.totalorder %v488, 1
  %vm525 = vcmp.eq.s32.totalorder %v491, 1
  %vm526 = vcmp.eq.s32.totalorder %v494, 1
  %vm527 = vcmp.eq.s32.totalorder %v497, 1
  %vm528 = vcmp.eq.s32.totalorder %v500, 1
  %vm529 = vcmp.eq.s32.totalorder %v503, 1
  %vm530 = vcmp.eq.s32.totalorder %v506, 1
  %vm531 = vcmp.eq.s32.totalorder %v509, 1
  %vm532 = vcmp.eq.s32.totalorder %v512, 1
  %vm533 = vcmp.eq.s32.totalorder %v515, 1
  %v534 = vsel %vm516, %v34, -1e+30
  %v535 = vsel %vm517, %v35, -1e+30
  %v536 = vsel %vm518, %v36, -1e+30
  %v537 = vsel %vm519, %v37, -1e+30
  %v538 = vsel %vm520, %v38, -1e+30
  %v539 = vsel %vm521, %v39, -1e+30
  %v540 = vsel %vm522, %v40, -1e+30
  %v541 = vsel %vm523, %v41, -1e+30
  %v542 = vsel %vm524, %v42, -1e+30
  %v543 = vsel %vm525, %v43, -1e+30
  %v544 = vsel %vm526, %v44, -1e+30
  %v545 = vsel %vm527, %v45, -1e+30
  %v546 = vsel %vm528, %v46, -1e+30
  %v547 = vsel %vm529, %v47, -1e+30
  %v548 = vsel %vm530, %v48, -1e+30
  %v549 = vsel %vm531, %v49, -1e+30
  %v550 = vsel %vm532, %v50, -1e+30
  %v551 = vsel %vm533, %v51, -1e+30
  %v552 = vmax.f32 %v534, %v538
  %v553 = vmax.f32 %v535, %v539
  %v554 = vmax.f32 %v536, %v540
  %v555 = vmax.f32 %v537, %v541
  %v556 = vmax.f32 %v552, %v542
  %v557 = vmax.f32 %v553, %v543
  %v558 = vmax.f32 %v554, %v544
  %v559 = vmax.f32 %v555, %v545
  %v560 = vmax.f32 %v556, %v546
  %v561 = vmax.f32 %v557, %v547
  %v562 = vmax.f32 %v558, %v548
  %v563 = vmax.f32 %v559, %v549
  %v564 = vmax.f32 %v560, %v550
  %v565 = vmax.f32 %v561, %v551
  %v566 = vmax.f32 %v564, %v565
  %v567 = vmax.f32 %v562, %v563
  %v568 = vmax.f32 %v566, %v567
  %v569 = vrot.slane %v568, 4
  %v570 = vmax.f32 %v568, %v569
  %v571 = vrot.slane %v570, 2
  %v572 = vmax.f32 %v570, %v571
  %v573 = vrot.slane %v572, 1
  %v574 = vmax.f32 %v572, %v573
  %vm575 = vcmp.gt.f32.partialorder %v169, 0.0
  %vm576 = vcmp.gt.f32.partialorder %v170, 0.0
  %vm577 = vcmp.gt.f32.partialorder %v171, 0.0
  %vm578 = vcmp.gt.f32.partialorder %v172, 0.0
  %vm579 = vcmp.gt.f32.partialorder %v173, 0.0
  %vm580 = vcmp.gt.f32.partialorder %v174, 0.0
  %vm581 = vcmp.gt.f32.partialorder %v175, 0.0
  %vm582 = vcmp.gt.f32.partialorder %v176, 0.0
  %vm583 = vcmp.gt.f32.partialorder %v177, 0.0
  %vm584 = vcmp.gt.f32.partialorder %v178, 0.0
  %vm585 = vcmp.gt.f32.partialorder %v179, 0.0
  %vm586 = vcmp.gt.f32.partialorder %v180, 0.0
  %vm587 = vcmp.gt.f32.partialorder %v181, 0.0
  %vm588 = vcmp.gt.f32.partialorder %v182, 0.0
  %vm589 = vcmp.gt.f32.partialorder %v183, 0.0
  %vm590 = vcmp.gt.f32.partialorder %v184, 0.0
  %vm591 = vcmp.gt.f32.partialorder %v185, 0.0
  %vm592 = vcmp.gt.f32.partialorder %v186, 0.0
  %v593 = vsel %vm575, 1, 0
  %v594 = vsel %vm576, 1, 0
  %v595 = vsel %vm577, 1, 0
  %v596 = vsel %vm578, 1, 0
  %v597 = vsel %vm579, 1, 0
  %v598 = vsel %vm580, 1, 0
  %v599 = vsel %vm581, 1, 0
  %v600 = vsel %vm582, 1, 0
  %v601 = vsel %vm583, 1, 0
  %v602 = vsel %vm584, 1, 0
  %v603 = vsel %vm585, 1, 0
  %v604 = vsel %vm586, 1, 0
  %v605 = vsel %vm587, 1, 0
  %v606 = vsel %vm588, 1, 0
  %v607 = vsel %vm589, 1, 0
  %v608 = vsel %vm590, 1, 0
  %v609 = vsel %vm591, 1, 0
  %v610 = vsel %vm592, 1, 0
  %611 = vset.pattern.permute.xlu0 0
  %612 = vperm.xlu0 %611, %v593
  %v613 = vpop.permute.xlu0 %612
  %614 = vset.pattern.permute.xlu0 0
  %615 = vperm.xlu0 %614, %v594
  %v616 = vpop.permute.xlu0 %615
  %617 = vset.pattern.permute.xlu0 0
  %618 = vperm.xlu0 %617, %v595
  %v619 = vpop.permute.xlu0 %618
  %620 = vset.pattern.permute.xlu0 0
  %621 = vperm.xlu0 %620, %v596
  %v622 = vpop.permute.xlu0 %621
  %623 = vset.pattern.permute.xlu0 0
  %624 = vperm.xlu0 %623, %v597
  %v625 = vpop.permute.xlu0 %624
  %626 = vset.pattern.permute.xlu0 0
  %627 = vperm.xlu0 %626, %v598
  %v628 = vpop.permute.xlu0 %627
  %629 = vset.pattern.permute.xlu0 0
  %630 = vperm.xlu0 %629, %v599
  %v631 = vpop.permute.xlu0 %630
  %632 = vset.pattern.permute.xlu0 0
  %633 = vperm.xlu0 %632, %v600
  %v634 = vpop.permute.xlu0 %633
  %635 = vset.pattern.permute.xlu0 0
  %636 = vperm.xlu0 %635, %v601
  %v637 = vpop.permute.xlu0 %636
  %638 = vset.pattern.permute.xlu0 0
  %639 = vperm.xlu0 %638, %v602
  %v640 = vpop.permute.xlu0 %639
  %641 = vset.pattern.permute.xlu0 0
  %642 = vperm.xlu0 %641, %v603
  %v643 = vpop.permute.xlu0 %642
  %644 = vset.pattern.permute.xlu0 0
  %645 = vperm.xlu0 %644, %v604
  %v646 = vpop.permute.xlu0 %645
  %647 = vset.pattern.permute.xlu0 0
  %648 = vperm.xlu0 %647, %v605
  %v649 = vpop.permute.xlu0 %648
  %650 = vset.pattern.permute.xlu0 0
  %651 = vperm.xlu0 %650, %v606
  %v652 = vpop.permute.xlu0 %651
  %653 = vset.pattern.permute.xlu0 0
  %654 = vperm.xlu0 %653, %v607
  %v655 = vpop.permute.xlu0 %654
  %656 = vset.pattern.permute.xlu0 0
  %657 = vperm.xlu0 %656, %v608
  %v658 = vpop.permute.xlu0 %657
  %659 = vset.pattern.permute.xlu0 0
  %660 = vperm.xlu0 %659, %v609
  %v661 = vpop.permute.xlu0 %660
  %662 = vset.pattern.permute.xlu0 0
  %663 = vperm.xlu0 %662, %v610
  %v664 = vpop.permute.xlu0 %663
  %vm665 = vcmp.eq.s32.totalorder %v613, 1
  %vm666 = vcmp.eq.s32.totalorder %v616, 1
  %vm667 = vcmp.eq.s32.totalorder %v619, 1
  %vm668 = vcmp.eq.s32.totalorder %v622, 1
  %vm669 = vcmp.eq.s32.totalorder %v625, 1
  %vm670 = vcmp.eq.s32.totalorder %v628, 1
  %vm671 = vcmp.eq.s32.totalorder %v631, 1
  %vm672 = vcmp.eq.s32.totalorder %v634, 1
  %vm673 = vcmp.eq.s32.totalorder %v637, 1
  %vm674 = vcmp.eq.s32.totalorder %v640, 1
  %vm675 = vcmp.eq.s32.totalorder %v643, 1
  %vm676 = vcmp.eq.s32.totalorder %v646, 1
  %vm677 = vcmp.eq.s32.totalorder %v649, 1
  %vm678 = vcmp.eq.s32.totalorder %v652, 1
  %vm679 = vcmp.eq.s32.totalorder %v655, 1
  %vm680 = vcmp.eq.s32.totalorder %v658, 1
  %vm681 = vcmp.eq.s32.totalorder %v661, 1
  %vm682 = vcmp.eq.s32.totalorder %v664, 1
  %v683 = vsel %vm665, %v34, -1e+30
  %v684 = vsel %vm666, %v35, -1e+30
  %v685 = vsel %vm667, %v36, -1e+30
  %v686 = vsel %vm668, %v37, -1e+30
  %v687 = vsel %vm669, %v38, -1e+30
  %v688 = vsel %vm670, %v39, -1e+30
  %v689 = vsel %vm671, %v40, -1e+30
  %v690 = vsel %vm672, %v41, -1e+30
  %v691 = vsel %vm673, %v42, -1e+30
  %v692 = vsel %vm674, %v43, -1e+30
  %v693 = vsel %vm675, %v44, -1e+30
  %v694 = vsel %vm676, %v45, -1e+30
  %v695 = vsel %vm677, %v46, -1e+30
  %v696 = vsel %vm678, %v47, -1e+30
  %v697 = vsel %vm679, %v48, -1e+30
  %v698 = vsel %vm680, %v49, -1e+30
  %v699 = vsel %vm681, %v50, -1e+30
  %v700 = vsel %vm682, %v51, -1e+30
  %v701 = vmax.f32 %v683, %v687
  %v702 = vmax.f32 %v684, %v688
  %v703 = vmax.f32 %v685, %v689
  %v704 = vmax.f32 %v686, %v690
  %v705 = vmax.f32 %v701, %v691
  %v706 = vmax.f32 %v702, %v692
  %v707 = vmax.f32 %v703, %v693
  %v708 = vmax.f32 %v704, %v694
  %v709 = vmax.f32 %v705, %v695
  %v710 = vmax.f32 %v706, %v696
  %v711 = vmax.f32 %v707, %v697
  %v712 = vmax.f32 %v708, %v698
  %v713 = vmax.f32 %v709, %v699
  %v714 = vmax.f32 %v710, %v700
  %v715 = vmax.f32 %v713, %v714
  %v716 = vmax.f32 %v711, %v712
  %v717 = vmax.f32 %v715, %v716
  %v718 = vrot.slane %v717, 4
  %v719 = vmax.f32 %v717, %v718
  %v720 = vrot.slane %v719, 2
  %v721 = vmax.f32 %v719, %v720
  %v722 = vrot.slane %v721, 1
  %v723 = vmax.f32 %v721, %v722
  %vm724 = vcmp.gt.f32.partialorder %v187, 0.0
  %vm725 = vcmp.gt.f32.partialorder %v188, 0.0
  %vm726 = vcmp.gt.f32.partialorder %v189, 0.0
  %vm727 = vcmp.gt.f32.partialorder %v190, 0.0
  %vm728 = vcmp.gt.f32.partialorder %v191, 0.0
  %vm729 = vcmp.gt.f32.partialorder %v192, 0.0
  %vm730 = vcmp.gt.f32.partialorder %v193, 0.0
  %vm731 = vcmp.gt.f32.partialorder %v194, 0.0
  %vm732 = vcmp.gt.f32.partialorder %v195, 0.0
  %vm733 = vcmp.gt.f32.partialorder %v196, 0.0
  %vm734 = vcmp.gt.f32.partialorder %v197, 0.0
  %vm735 = vcmp.gt.f32.partialorder %v198, 0.0
  %vm736 = vcmp.gt.f32.partialorder %v199, 0.0
  %vm737 = vcmp.gt.f32.partialorder %v200, 0.0
  %vm738 = vcmp.gt.f32.partialorder %v201, 0.0
  %vm739 = vcmp.gt.f32.partialorder %v202, 0.0
  %vm740 = vcmp.gt.f32.partialorder %v203, 0.0
  %vm741 = vcmp.gt.f32.partialorder %v204, 0.0
  %v742 = vsel %vm724, 1, 0
  %v743 = vsel %vm725, 1, 0
  %v744 = vsel %vm726, 1, 0
  %v745 = vsel %vm727, 1, 0
  %v746 = vsel %vm728, 1, 0
  %v747 = vsel %vm729, 1, 0
  %v748 = vsel %vm730, 1, 0
  %v749 = vsel %vm731, 1, 0
  %v750 = vsel %vm732, 1, 0
  %v751 = vsel %vm733, 1, 0
  %v752 = vsel %vm734, 1, 0
  %v753 = vsel %vm735, 1, 0
  %v754 = vsel %vm736, 1, 0
  %v755 = vsel %vm737, 1, 0
  %v756 = vsel %vm738, 1, 0
  %v757 = vsel %vm739, 1, 0
  %v758 = vsel %vm740, 1, 0
  %v759 = vsel %vm741, 1, 0
  %760 = vset.pattern.permute.xlu0 0
  %761 = vperm.xlu0 %760, %v742
  %v762 = vpop.permute.xlu0 %761
  %763 = vset.pattern.permute.xlu0 0
  %764 = vperm.xlu0 %763, %v743
  %v765 = vpop.permute.xlu0 %764
  %766 = vset.pattern.permute.xlu0 0
  %767 = vperm.xlu0 %766, %v744
  %v768 = vpop.permute.xlu0 %767
  %769 = vset.pattern.permute.xlu0 0
  %770 = vperm.xlu0 %769, %v745
  %v771 = vpop.permute.xlu0 %770
  %772 = vset.pattern.permute.xlu0 0
  %773 = vperm.xlu0 %772, %v746
  %v774 = vpop.permute.xlu0 %773
  %775 = vset.pattern.permute.xlu0 0
  %776 = vperm.xlu0 %775, %v747
  %v777 = vpop.permute.xlu0 %776
  %778 = vset.pattern.permute.xlu0 0
  %779 = vperm.xlu0 %778, %v748
  %v780 = vpop.permute.xlu0 %779
  %781 = vset.pattern.permute.xlu0 0
  %782 = vperm.xlu0 %781, %v749
  %v783 = vpop.permute.xlu0 %782
  %784 = vset.pattern.permute.xlu0 0
  %785 = vperm.xlu0 %784, %v750
  %v786 = vpop.permute.xlu0 %785
  %787 = vset.pattern.permute.xlu0 0
  %788 = vperm.xlu0 %787, %v751
  %v789 = vpop.permute.xlu0 %788
  %790 = vset.pattern.permute.xlu0 0
  %791 = vperm.xlu0 %790, %v752
  %v792 = vpop.permute.xlu0 %791
  %793 = vset.pattern.permute.xlu0 0
  %794 = vperm.xlu0 %793, %v753
  %v795 = vpop.permute.xlu0 %794
  %796 = vset.pattern.permute.xlu0 0
  %797 = vperm.xlu0 %796, %v754
  %v798 = vpop.permute.xlu0 %797
  %799 = vset.pattern.permute.xlu0 0
  %800 = vperm.xlu0 %799, %v755
  %v801 = vpop.permute.xlu0 %800
  %802 = vset.pattern.permute.xlu0 0
  %803 = vperm.xlu0 %802, %v756
  %v804 = vpop.permute.xlu0 %803
  %805 = vset.pattern.permute.xlu0 0
  %806 = vperm.xlu0 %805, %v757
  %v807 = vpop.permute.xlu0 %806
  %808 = vset.pattern.permute.xlu0 0
  %809 = vperm.xlu0 %808, %v758
  %v810 = vpop.permute.xlu0 %809
  %811 = vset.pattern.permute.xlu0 0
  %812 = vperm.xlu0 %811, %v759
  %v813 = vpop.permute.xlu0 %812
  %vm814 = vcmp.eq.s32.totalorder %v762, 1
  %vm815 = vcmp.eq.s32.totalorder %v765, 1
  %vm816 = vcmp.eq.s32.totalorder %v768, 1
  %vm817 = vcmp.eq.s32.totalorder %v771, 1
  %vm818 = vcmp.eq.s32.totalorder %v774, 1
  %vm819 = vcmp.eq.s32.totalorder %v777, 1
  %vm820 = vcmp.eq.s32.totalorder %v780, 1
  %vm821 = vcmp.eq.s32.totalorder %v783, 1
  %vm822 = vcmp.eq.s32.totalorder %v786, 1
  %vm823 = vcmp.eq.s32.totalorder %v789, 1
  %vm824 = vcmp.eq.s32.totalorder %v792, 1
  %vm825 = vcmp.eq.s32.totalorder %v795, 1
  %vm826 = vcmp.eq.s32.totalorder %v798, 1
  %vm827 = vcmp.eq.s32.totalorder %v801, 1
  %vm828 = vcmp.eq.s32.totalorder %v804, 1
  %vm829 = vcmp.eq.s32.totalorder %v807, 1
  %vm830 = vcmp.eq.s32.totalorder %v810, 1
  %vm831 = vcmp.eq.s32.totalorder %v813, 1
  %v832 = vsel %vm814, %v34, -1e+30
  %v833 = vsel %vm815, %v35, -1e+30
  %v834 = vsel %vm816, %v36, -1e+30
  %v835 = vsel %vm817, %v37, -1e+30
  %v836 = vsel %vm818, %v38, -1e+30
  %v837 = vsel %vm819, %v39, -1e+30
  %v838 = vsel %vm820, %v40, -1e+30
  %v839 = vsel %vm821, %v41, -1e+30
  %v840 = vsel %vm822, %v42, -1e+30
  %v841 = vsel %vm823, %v43, -1e+30
  %v842 = vsel %vm824, %v44, -1e+30
  %v843 = vsel %vm825, %v45, -1e+30
  %v844 = vsel %vm826, %v46, -1e+30
  %v845 = vsel %vm827, %v47, -1e+30
  %v846 = vsel %vm828, %v48, -1e+30
  %v847 = vsel %vm829, %v49, -1e+30
  %v848 = vsel %vm830, %v50, -1e+30
  %v849 = vsel %vm831, %v51, -1e+30
  %v850 = vmax.f32 %v832, %v836
  %v851 = vmax.f32 %v833, %v837
  %v852 = vmax.f32 %v834, %v838
  %v853 = vmax.f32 %v835, %v839
  %v854 = vmax.f32 %v850, %v840
  %v855 = vmax.f32 %v851, %v841
  %v856 = vmax.f32 %v852, %v842
  %v857 = vmax.f32 %v853, %v843
  %v858 = vmax.f32 %v854, %v844
  %v859 = vmax.f32 %v855, %v845
  %v860 = vmax.f32 %v856, %v846
  %v861 = vmax.f32 %v857, %v847
  %v862 = vmax.f32 %v858, %v848
  %v863 = vmax.f32 %v859, %v849
  %v864 = vmax.f32 %v862, %v863
  %v865 = vmax.f32 %v860, %v861
  %v866 = vmax.f32 %v864, %v865
  %v867 = vrot.slane %v866, 4
  %v868 = vmax.f32 %v866, %v867
  %v869 = vrot.slane %v868, 2
  %v870 = vmax.f32 %v868, %v869
  %v871 = vrot.slane %v870, 1
  %v872 = vmax.f32 %v870, %v871
  %vm873 = vcmp.gt.f32.partialorder %v205, 0.0
  %vm874 = vcmp.gt.f32.partialorder %v206, 0.0
  %vm875 = vcmp.gt.f32.partialorder %v207, 0.0
  %vm876 = vcmp.gt.f32.partialorder %v208, 0.0
  %vm877 = vcmp.gt.f32.partialorder %v209, 0.0
  %vm878 = vcmp.gt.f32.partialorder %v210, 0.0
  %vm879 = vcmp.gt.f32.partialorder %v211, 0.0
  %vm880 = vcmp.gt.f32.partialorder %v212, 0.0
  %vm881 = vcmp.gt.f32.partialorder %v213, 0.0
  %vm882 = vcmp.gt.f32.partialorder %v214, 0.0
  %vm883 = vcmp.gt.f32.partialorder %v215, 0.0
  %vm884 = vcmp.gt.f32.partialorder %v216, 0.0
  %vm885 = vcmp.gt.f32.partialorder %v217, 0.0
  %vm886 = vcmp.gt.f32.partialorder %v218, 0.0
  %vm887 = vcmp.gt.f32.partialorder %v219, 0.0
  %vm888 = vcmp.gt.f32.partialorder %v220, 0.0
  %vm889 = vcmp.gt.f32.partialorder %v221, 0.0
  %vm890 = vcmp.gt.f32.partialorder %v222, 0.0
  %v891 = vsel %vm873, 1, 0
  %v892 = vsel %vm874, 1, 0
  %v893 = vsel %vm875, 1, 0
  %v894 = vsel %vm876, 1, 0
  %v895 = vsel %vm877, 1, 0
  %v896 = vsel %vm878, 1, 0
  %v897 = vsel %vm879, 1, 0
  %v898 = vsel %vm880, 1, 0
  %v899 = vsel %vm881, 1, 0
  %v900 = vsel %vm882, 1, 0
  %v901 = vsel %vm883, 1, 0
  %v902 = vsel %vm884, 1, 0
  %v903 = vsel %vm885, 1, 0
  %v904 = vsel %vm886, 1, 0
  %v905 = vsel %vm887, 1, 0
  %v906 = vsel %vm888, 1, 0
  %v907 = vsel %vm889, 1, 0
  %v908 = vsel %vm890, 1, 0
  %909 = vset.pattern.permute.xlu0 0
  %910 = vperm.xlu0 %909, %v891
  %v911 = vpop.permute.xlu0 %910
  %912 = vset.pattern.permute.xlu0 0
  %913 = vperm.xlu0 %912, %v892
  %v914 = vpop.permute.xlu0 %913
  %915 = vset.pattern.permute.xlu0 0
  %916 = vperm.xlu0 %915, %v893
  %v917 = vpop.permute.xlu0 %916
  %918 = vset.pattern.permute.xlu0 0
  %919 = vperm.xlu0 %918, %v894
  %v920 = vpop.permute.xlu0 %919
  %921 = vset.pattern.permute.xlu0 0
  %922 = vperm.xlu0 %921, %v895
  %v923 = vpop.permute.xlu0 %922
  %924 = vset.pattern.permute.xlu0 0
  %925 = vperm.xlu0 %924, %v896
  %v926 = vpop.permute.xlu0 %925
  %927 = vset.pattern.permute.xlu0 0
  %928 = vperm.xlu0 %927, %v897
  %v929 = vpop.permute.xlu0 %928
  %930 = vset.pattern.permute.xlu0 0
  %931 = vperm.xlu0 %930, %v898
  %v932 = vpop.permute.xlu0 %931
  %933 = vset.pattern.permute.xlu0 0
  %934 = vperm.xlu0 %933, %v899
  %v935 = vpop.permute.xlu0 %934
  %936 = vset.pattern.permute.xlu0 0
  %937 = vperm.xlu0 %936, %v900
  %v938 = vpop.permute.xlu0 %937
  %939 = vset.pattern.permute.xlu0 0
  %940 = vperm.xlu0 %939, %v901
  %v941 = vpop.permute.xlu0 %940
  %942 = vset.pattern.permute.xlu0 0
  %943 = vperm.xlu0 %942, %v902
  %v944 = vpop.permute.xlu0 %943
  %945 = vset.pattern.permute.xlu0 0
  %946 = vperm.xlu0 %945, %v903
  %v947 = vpop.permute.xlu0 %946
  %948 = vset.pattern.permute.xlu0 0
  %949 = vperm.xlu0 %948, %v904
  %v950 = vpop.permute.xlu0 %949
  %951 = vset.pattern.permute.xlu0 0
  %952 = vperm.xlu0 %951, %v905
  %v953 = vpop.permute.xlu0 %952
  %954 = vset.pattern.permute.xlu0 0
  %955 = vperm.xlu0 %954, %v906
  %v956 = vpop.permute.xlu0 %955
  %957 = vset.pattern.permute.xlu0 0
  %958 = vperm.xlu0 %957, %v907
  %v959 = vpop.permute.xlu0 %958
  %960 = vset.pattern.permute.xlu0 0
  %961 = vperm.xlu0 %960, %v908
  %v962 = vpop.permute.xlu0 %961
  %vm963 = vcmp.eq.s32.totalorder %v911, 1
  %vm964 = vcmp.eq.s32.totalorder %v914, 1
  %vm965 = vcmp.eq.s32.totalorder %v917, 1
  %vm966 = vcmp.eq.s32.totalorder %v920, 1
  %vm967 = vcmp.eq.s32.totalorder %v923, 1
  %vm968 = vcmp.eq.s32.totalorder %v926, 1
  %vm969 = vcmp.eq.s32.totalorder %v929, 1
  %vm970 = vcmp.eq.s32.totalorder %v932, 1
  %vm971 = vcmp.eq.s32.totalorder %v935, 1
  %vm972 = vcmp.eq.s32.totalorder %v938, 1
  %vm973 = vcmp.eq.s32.totalorder %v941, 1
  %vm974 = vcmp.eq.s32.totalorder %v944, 1
  %vm975 = vcmp.eq.s32.totalorder %v947, 1
  %vm976 = vcmp.eq.s32.totalorder %v950, 1
  %vm977 = vcmp.eq.s32.totalorder %v953, 1
  %vm978 = vcmp.eq.s32.totalorder %v956, 1
  %vm979 = vcmp.eq.s32.totalorder %v959, 1
  %vm980 = vcmp.eq.s32.totalorder %v962, 1
  %v981 = vsel %vm963, %v34, -1e+30
  %v982 = vsel %vm964, %v35, -1e+30
  %v983 = vsel %vm965, %v36, -1e+30
  %v984 = vsel %vm966, %v37, -1e+30
  %v985 = vsel %vm967, %v38, -1e+30
  %v986 = vsel %vm968, %v39, -1e+30
  %v987 = vsel %vm969, %v40, -1e+30
  %v988 = vsel %vm970, %v41, -1e+30
  %v989 = vsel %vm971, %v42, -1e+30
  %v990 = vsel %vm972, %v43, -1e+30
  %v991 = vsel %vm973, %v44, -1e+30
  %v992 = vsel %vm974, %v45, -1e+30
  %v993 = vsel %vm975, %v46, -1e+30
  %v994 = vsel %vm976, %v47, -1e+30
  %v995 = vsel %vm977, %v48, -1e+30
  %v996 = vsel %vm978, %v49, -1e+30
  %v997 = vsel %vm979, %v50, -1e+30
  %v998 = vsel %vm980, %v51, -1e+30
  %v999 = vmax.f32 %v981, %v985
  %v1000 = vmax.f32 %v982, %v986
  %v1001 = vmax.f32 %v983, %v987
  %v1002 = vmax.f32 %v984, %v988
  %v1003 = vmax.f32 %v999, %v989
  %v1004 = vmax.f32 %v1000, %v990
  %v1005 = vmax.f32 %v1001, %v991
  %v1006 = vmax.f32 %v1002, %v992
  %v1007 = vmax.f32 %v1003, %v993
  %v1008 = vmax.f32 %v1004, %v994
  %v1009 = vmax.f32 %v1005, %v995
  %v1010 = vmax.f32 %v1006, %v996
  %v1011 = vmax.f32 %v1007, %v997
  %v1012 = vmax.f32 %v1008, %v998
  %v1013 = vmax.f32 %v1011, %v1012
  %v1014 = vmax.f32 %v1009, %v1010
  %v1015 = vmax.f32 %v1013, %v1014
  %v1016 = vrot.slane %v1015, 4
  %v1017 = vmax.f32 %v1015, %v1016
  %v1018 = vrot.slane %v1017, 2
  %v1019 = vmax.f32 %v1017, %v1018
  %v1020 = vrot.slane %v1019, 1
  %v1021 = vmax.f32 %v1019, %v1020
  %vm1022 = vcmp.gt.f32.partialorder %v223, 0.0
  %vm1023 = vcmp.gt.f32.partialorder %v224, 0.0
  %vm1024 = vcmp.gt.f32.partialorder %v225, 0.0
  %vm1025 = vcmp.gt.f32.partialorder %v226, 0.0
  %vm1026 = vcmp.gt.f32.partialorder %v227, 0.0
  %vm1027 = vcmp.gt.f32.partialorder %v228, 0.0
  %vm1028 = vcmp.gt.f32.partialorder %v229, 0.0
  %vm1029 = vcmp.gt.f32.partialorder %v230, 0.0
  %vm1030 = vcmp.gt.f32.partialorder %v231, 0.0
  %vm1031 = vcmp.gt.f32.partialorder %v232, 0.0
  %vm1032 = vcmp.gt.f32.partialorder %v233, 0.0
  %vm1033 = vcmp.gt.f32.partialorder %v234, 0.0
  %vm1034 = vcmp.gt.f32.partialorder %v235, 0.0
  %vm1035 = vcmp.gt.f32.partialorder %v236, 0.0
  %vm1036 = vcmp.gt.f32.partialorder %v237, 0.0
  %vm1037 = vcmp.gt.f32.partialorder %v238, 0.0
  %vm1038 = vcmp.gt.f32.partialorder %v239, 0.0
  %vm1039 = vcmp.gt.f32.partialorder %v240, 0.0
  %v1040 = vsel %vm1022, 1, 0
  %v1041 = vsel %vm1023, 1, 0
  %v1042 = vsel %vm1024, 1, 0
  %v1043 = vsel %vm1025, 1, 0
  %v1044 = vsel %vm1026, 1, 0
  %v1045 = vsel %vm1027, 1, 0
  %v1046 = vsel %vm1028, 1, 0
  %v1047 = vsel %vm1029, 1, 0
  %v1048 = vsel %vm1030, 1, 0
  %v1049 = vsel %vm1031, 1, 0
  %v1050 = vsel %vm1032, 1, 0
  %v1051 = vsel %vm1033, 1, 0
  %v1052 = vsel %vm1034, 1, 0
  %v1053 = vsel %vm1035, 1, 0
  %v1054 = vsel %vm1036, 1, 0
  %v1055 = vsel %vm1037, 1, 0
  %v1056 = vsel %vm1038, 1, 0
  %v1057 = vsel %vm1039, 1, 0
  %1058 = vset.pattern.permute.xlu0 0
  %1059 = vperm.xlu0 %1058, %v1040
  %v1060 = vpop.permute.xlu0 %1059
  %1061 = vset.pattern.permute.xlu0 0
  %1062 = vperm.xlu0 %1061, %v1041
  %v1063 = vpop.permute.xlu0 %1062
  %1064 = vset.pattern.permute.xlu0 0
  %1065 = vperm.xlu0 %1064, %v1042
  %v1066 = vpop.permute.xlu0 %1065
  %1067 = vset.pattern.permute.xlu0 0
  %1068 = vperm.xlu0 %1067, %v1043
  %v1069 = vpop.permute.xlu0 %1068
  %1070 = vset.pattern.permute.xlu0 0
  %1071 = vperm.xlu0 %1070, %v1044
  %v1072 = vpop.permute.xlu0 %1071
  %1073 = vset.pattern.permute.xlu0 0
  %1074 = vperm.xlu0 %1073, %v1045
  %v1075 = vpop.permute.xlu0 %1074
  %1076 = vset.pattern.permute.xlu0 0
  %1077 = vperm.xlu0 %1076, %v1046
  %v1078 = vpop.permute.xlu0 %1077
  %1079 = vset.pattern.permute.xlu0 0
  %1080 = vperm.xlu0 %1079, %v1047
  %v1081 = vpop.permute.xlu0 %1080
  %1082 = vset.pattern.permute.xlu0 0
  %1083 = vperm.xlu0 %1082, %v1048
  %v1084 = vpop.permute.xlu0 %1083
  %1085 = vset.pattern.permute.xlu0 0
  %1086 = vperm.xlu0 %1085, %v1049
  %v1087 = vpop.permute.xlu0 %1086
  %1088 = vset.pattern.permute.xlu0 0
  %1089 = vperm.xlu0 %1088, %v1050
  %v1090 = vpop.permute.xlu0 %1089
  %1091 = vset.pattern.permute.xlu0 0
  %1092 = vperm.xlu0 %1091, %v1051
  %v1093 = vpop.permute.xlu0 %1092
  %1094 = vset.pattern.permute.xlu0 0
  %1095 = vperm.xlu0 %1094, %v1052
  %v1096 = vpop.permute.xlu0 %1095
  %1097 = vset.pattern.permute.xlu0 0
  %1098 = vperm.xlu0 %1097, %v1053
  %v1099 = vpop.permute.xlu0 %1098
  %1100 = vset.pattern.permute.xlu0 0
  %1101 = vperm.xlu0 %1100, %v1054
  %v1102 = vpop.permute.xlu0 %1101
  %1103 = vset.pattern.permute.xlu0 0
  %1104 = vperm.xlu0 %1103, %v1055
  %v1105 = vpop.permute.xlu0 %1104
  %1106 = vset.pattern.permute.xlu0 0
  %1107 = vperm.xlu0 %1106, %v1056
  %v1108 = vpop.permute.xlu0 %1107
  %1109 = vset.pattern.permute.xlu0 0
  %1110 = vperm.xlu0 %1109, %v1057
  %v1111 = vpop.permute.xlu0 %1110
  %vm1112 = vcmp.eq.s32.totalorder %v1060, 1
  %vm1113 = vcmp.eq.s32.totalorder %v1063, 1
  %vm1114 = vcmp.eq.s32.totalorder %v1066, 1
  %vm1115 = vcmp.eq.s32.totalorder %v1069, 1
  %vm1116 = vcmp.eq.s32.totalorder %v1072, 1
  %vm1117 = vcmp.eq.s32.totalorder %v1075, 1
  %vm1118 = vcmp.eq.s32.totalorder %v1078, 1
  %vm1119 = vcmp.eq.s32.totalorder %v1081, 1
  %vm1120 = vcmp.eq.s32.totalorder %v1084, 1
  %vm1121 = vcmp.eq.s32.totalorder %v1087, 1
  %vm1122 = vcmp.eq.s32.totalorder %v1090, 1
  %vm1123 = vcmp.eq.s32.totalorder %v1093, 1
  %vm1124 = vcmp.eq.s32.totalorder %v1096, 1
  %vm1125 = vcmp.eq.s32.totalorder %v1099, 1
  %vm1126 = vcmp.eq.s32.totalorder %v1102, 1
  %vm1127 = vcmp.eq.s32.totalorder %v1105, 1
  %vm1128 = vcmp.eq.s32.totalorder %v1108, 1
  %vm1129 = vcmp.eq.s32.totalorder %v1111, 1
  %v1130 = vsel %vm1112, %v34, -1e+30
  %v1131 = vsel %vm1113, %v35, -1e+30
  %v1132 = vsel %vm1114, %v36, -1e+30
  %v1133 = vsel %vm1115, %v37, -1e+30
  %v1134 = vsel %vm1116, %v38, -1e+30
  %v1135 = vsel %vm1117, %v39, -1e+30
  %v1136 = vsel %vm1118, %v40, -1e+30
  %v1137 = vsel %vm1119, %v41, -1e+30
  %v1138 = vsel %vm1120, %v42, -1e+30
  %v1139 = vsel %vm1121, %v43, -1e+30
  %v1140 = vsel %vm1122, %v44, -1e+30
  %v1141 = vsel %vm1123, %v45, -1e+30
  %v1142 = vsel %vm1124, %v46, -1e+30
  %v1143 = vsel %vm1125, %v47, -1e+30
  %v1144 = vsel %vm1126, %v48, -1e+30
  %v1145 = vsel %vm1127, %v49, -1e+30
  %v1146 = vsel %vm1128, %v50, -1e+30
  %v1147 = vsel %vm1129, %v51, -1e+30
  %v1148 = vmax.f32 %v1130, %v1134
  %v1149 = vmax.f32 %v1131, %v1135
  %v1150 = vmax.f32 %v1132, %v1136
  %v1151 = vmax.f32 %v1133, %v1137
  %v1152 = vmax.f32 %v1148, %v1138
  %v1153 = vmax.f32 %v1149, %v1139
  %v1154 = vmax.f32 %v1150, %v1140
  %v1155 = vmax.f32 %v1151, %v1141
  %v1156 = vmax.f32 %v1152, %v1142
  %v1157 = vmax.f32 %v1153, %v1143
  %v1158 = vmax.f32 %v1154, %v1144
  %v1159 = vmax.f32 %v1155, %v1145
  %v1160 = vmax.f32 %v1156, %v1146
  %v1161 = vmax.f32 %v1157, %v1147
  %v1162 = vmax.f32 %v1160, %v1161
  %v1163 = vmax.f32 %v1158, %v1159
  %v1164 = vmax.f32 %v1162, %v1163
  %v1165 = vrot.slane %v1164, 4
  %v1166 = vmax.f32 %v1164, %v1165
  %v1167 = vrot.slane %v1166, 2
  %v1168 = vmax.f32 %v1166, %v1167
  %v1169 = vrot.slane %v1168, 1
  %v1170 = vmax.f32 %v1168, %v1169
  %vm1171 = vcmp.gt.f32.partialorder %v241, 0.0
  %vm1172 = vcmp.gt.f32.partialorder %v242, 0.0
  %vm1173 = vcmp.gt.f32.partialorder %v243, 0.0
  %vm1174 = vcmp.gt.f32.partialorder %v244, 0.0
  %vm1175 = vcmp.gt.f32.partialorder %v245, 0.0
  %vm1176 = vcmp.gt.f32.partialorder %v246, 0.0
  %vm1177 = vcmp.gt.f32.partialorder %v247, 0.0
  %vm1178 = vcmp.gt.f32.partialorder %v248, 0.0
  %vm1179 = vcmp.gt.f32.partialorder %v249, 0.0
  %vm1180 = vcmp.gt.f32.partialorder %v250, 0.0
  %vm1181 = vcmp.gt.f32.partialorder %v251, 0.0
  %vm1182 = vcmp.gt.f32.partialorder %v252, 0.0
  %vm1183 = vcmp.gt.f32.partialorder %v253, 0.0
  %vm1184 = vcmp.gt.f32.partialorder %v254, 0.0
  %vm1185 = vcmp.gt.f32.partialorder %v255, 0.0
  %vm1186 = vcmp.gt.f32.partialorder %v256, 0.0
  %vm1187 = vcmp.gt.f32.partialorder %v257, 0.0
  %vm1188 = vcmp.gt.f32.partialorder %v258, 0.0
  %v1189 = vsel %vm1171, 1, 0
  %v1190 = vsel %vm1172, 1, 0
  %v1191 = vsel %vm1173, 1, 0
  %v1192 = vsel %vm1174, 1, 0
  %v1193 = vsel %vm1175, 1, 0
  %v1194 = vsel %vm1176, 1, 0
  %v1195 = vsel %vm1177, 1, 0
  %v1196 = vsel %vm1178, 1, 0
  %v1197 = vsel %vm1179, 1, 0
  %v1198 = vsel %vm1180, 1, 0
  %v1199 = vsel %vm1181, 1, 0
  %v1200 = vsel %vm1182, 1, 0
  %v1201 = vsel %vm1183, 1, 0
  %v1202 = vsel %vm1184, 1, 0
  %v1203 = vsel %vm1185, 1, 0
  %v1204 = vsel %vm1186, 1, 0
  %v1205 = vsel %vm1187, 1, 0
  %v1206 = vsel %vm1188, 1, 0
  %1207 = vset.pattern.permute.xlu0 0
  %1208 = vperm.xlu0 %1207, %v1189
  %v1209 = vpop.permute.xlu0 %1208
  %1210 = vset.pattern.permute.xlu0 0
  %1211 = vperm.xlu0 %1210, %v1190
  %v1212 = vpop.permute.xlu0 %1211
  %1213 = vset.pattern.permute.xlu0 0
  %1214 = vperm.xlu0 %1213, %v1191
  %v1215 = vpop.permute.xlu0 %1214
  %1216 = vset.pattern.permute.xlu0 0
  %1217 = vperm.xlu0 %1216, %v1192
  %v1218 = vpop.permute.xlu0 %1217
  %1219 = vset.pattern.permute.xlu0 0
  %1220 = vperm.xlu0 %1219, %v1193
  %v1221 = vpop.permute.xlu0 %1220
  %1222 = vset.pattern.permute.xlu0 0
  %1223 = vperm.xlu0 %1222, %v1194
  %v1224 = vpop.permute.xlu0 %1223
  %1225 = vset.pattern.permute.xlu0 0
  %1226 = vperm.xlu0 %1225, %v1195
  %v1227 = vpop.permute.xlu0 %1226
  %1228 = vset.pattern.permute.xlu0 0
  %1229 = vperm.xlu0 %1228, %v1196
  %v1230 = vpop.permute.xlu0 %1229
  %1231 = vset.pattern.permute.xlu0 0
  %1232 = vperm.xlu0 %1231, %v1197
  %v1233 = vpop.permute.xlu0 %1232
  %1234 = vset.pattern.permute.xlu0 0
  %1235 = vperm.xlu0 %1234, %v1198
  %v1236 = vpop.permute.xlu0 %1235
  %1237 = vset.pattern.permute.xlu0 0
  %1238 = vperm.xlu0 %1237, %v1199
  %v1239 = vpop.permute.xlu0 %1238
  %1240 = vset.pattern.permute.xlu0 0
  %1241 = vperm.xlu0 %1240, %v1200
  %v1242 = vpop.permute.xlu0 %1241
  %1243 = vset.pattern.permute.xlu0 0
  %1244 = vperm.xlu0 %1243, %v1201
  %v1245 = vpop.permute.xlu0 %1244
  %1246 = vset.pattern.permute.xlu0 0
  %1247 = vperm.xlu0 %1246, %v1202
  %v1248 = vpop.permute.xlu0 %1247
  %1249 = vset.pattern.permute.xlu0 0
  %1250 = vperm.xlu0 %1249, %v1203
  %v1251 = vpop.permute.xlu0 %1250
  %1252 = vset.pattern.permute.xlu0 0
  %1253 = vperm.xlu0 %1252, %v1204
  %v1254 = vpop.permute.xlu0 %1253
  %1255 = vset.pattern.permute.xlu0 0
  %1256 = vperm.xlu0 %1255, %v1205
  %v1257 = vpop.permute.xlu0 %1256
  %1258 = vset.pattern.permute.xlu0 0
  %1259 = vperm.xlu0 %1258, %v1206
  %v1260 = vpop.permute.xlu0 %1259
  %vm1261 = vcmp.eq.s32.totalorder %v1209, 1
  %vm1262 = vcmp.eq.s32.totalorder %v1212, 1
  %vm1263 = vcmp.eq.s32.totalorder %v1215, 1
  %vm1264 = vcmp.eq.s32.totalorder %v1218, 1
  %vm1265 = vcmp.eq.s32.totalorder %v1221, 1
  %vm1266 = vcmp.eq.s32.totalorder %v1224, 1
  %vm1267 = vcmp.eq.s32.totalorder %v1227, 1
  %vm1268 = vcmp.eq.s32.totalorder %v1230, 1
  %vm1269 = vcmp.eq.s32.totalorder %v1233, 1
  %vm1270 = vcmp.eq.s32.totalorder %v1236, 1
  %vm1271 = vcmp.eq.s32.totalorder %v1239, 1
  %vm1272 = vcmp.eq.s32.totalorder %v1242, 1
  %vm1273 = vcmp.eq.s32.totalorder %v1245, 1
  %vm1274 = vcmp.eq.s32.totalorder %v1248, 1
  %vm1275 = vcmp.eq.s32.totalorder %v1251, 1
  %vm1276 = vcmp.eq.s32.totalorder %v1254, 1
  %vm1277 = vcmp.eq.s32.totalorder %v1257, 1
  %vm1278 = vcmp.eq.s32.totalorder %v1260, 1
  %v1279 = vsel %vm1261, %v34, -1e+30
  %v1280 = vsel %vm1262, %v35, -1e+30
  %v1281 = vsel %vm1263, %v36, -1e+30
  %v1282 = vsel %vm1264, %v37, -1e+30
  %v1283 = vsel %vm1265, %v38, -1e+30
  %v1284 = vsel %vm1266, %v39, -1e+30
  %v1285 = vsel %vm1267, %v40, -1e+30
  %v1286 = vsel %vm1268, %v41, -1e+30
  %v1287 = vsel %vm1269, %v42, -1e+30
  %v1288 = vsel %vm1270, %v43, -1e+30
  %v1289 = vsel %vm1271, %v44, -1e+30
  %v1290 = vsel %vm1272, %v45, -1e+30
  %v1291 = vsel %vm1273, %v46, -1e+30
  %v1292 = vsel %vm1274, %v47, -1e+30
  %v1293 = vsel %vm1275, %v48, -1e+30
  %v1294 = vsel %vm1276, %v49, -1e+30
  %v1295 = vsel %vm1277, %v50, -1e+30
  %v1296 = vsel %vm1278, %v51, -1e+30
  %v1297 = vmax.f32 %v1279, %v1283
  %v1298 = vmax.f32 %v1280, %v1284
  %v1299 = vmax.f32 %v1281, %v1285
  %v1300 = vmax.f32 %v1282, %v1286
  %v1301 = vmax.f32 %v1297, %v1287
  %v1302 = vmax.f32 %v1298, %v1288
  %v1303 = vmax.f32 %v1299, %v1289
  %v1304 = vmax.f32 %v1300, %v1290
  %v1305 = vmax.f32 %v1301, %v1291
  %v1306 = vmax.f32 %v1302, %v1292
  %v1307 = vmax.f32 %v1303, %v1293
  %v1308 = vmax.f32 %v1304, %v1294
  %v1309 = vmax.f32 %v1305, %v1295
  %v1310 = vmax.f32 %v1306, %v1296
  %v1311 = vmax.f32 %v1309, %v1310
  %v1312 = vmax.f32 %v1307, %v1308
  %v1313 = vmax.f32 %v1311, %v1312
  %v1314 = vrot.slane %v1313, 4
  %v1315 = vmax.f32 %v1313, %v1314
  %v1316 = vrot.slane %v1315, 2
  %v1317 = vmax.f32 %v1315, %v1316
  %v1318 = vrot.slane %v1317, 1
  %v1319 = vmax.f32 %v1317, %v1318
  %vm1320 = vcmp.gt.f32.partialorder %v259, 0.0
  %vm1321 = vcmp.gt.f32.partialorder %v260, 0.0
  %vm1322 = vcmp.gt.f32.partialorder %v261, 0.0
  %vm1323 = vcmp.gt.f32.partialorder %v262, 0.0
  %vm1324 = vcmp.gt.f32.partialorder %v263, 0.0
  %vm1325 = vcmp.gt.f32.partialorder %v264, 0.0
  %vm1326 = vcmp.gt.f32.partialorder %v265, 0.0
  %vm1327 = vcmp.gt.f32.partialorder %v266, 0.0
  %vm1328 = vcmp.gt.f32.partialorder %v267, 0.0
  %vm1329 = vcmp.gt.f32.partialorder %v268, 0.0
  %vm1330 = vcmp.gt.f32.partialorder %v269, 0.0
  %vm1331 = vcmp.gt.f32.partialorder %v270, 0.0
  %vm1332 = vcmp.gt.f32.partialorder %v271, 0.0
  %vm1333 = vcmp.gt.f32.partialorder %v272, 0.0
  %vm1334 = vcmp.gt.f32.partialorder %v273, 0.0
  %vm1335 = vcmp.gt.f32.partialorder %v274, 0.0
  %vm1336 = vcmp.gt.f32.partialorder %v275, 0.0
  %vm1337 = vcmp.gt.f32.partialorder %v276, 0.0
  %v1338 = vsel %vm1320, 1, 0
  %v1339 = vsel %vm1321, 1, 0
  %v1340 = vsel %vm1322, 1, 0
  %v1341 = vsel %vm1323, 1, 0
  %v1342 = vsel %vm1324, 1, 0
  %v1343 = vsel %vm1325, 1, 0
  %v1344 = vsel %vm1326, 1, 0
  %v1345 = vsel %vm1327, 1, 0
  %v1346 = vsel %vm1328, 1, 0
  %v1347 = vsel %vm1329, 1, 0
  %v1348 = vsel %vm1330, 1, 0
  %v1349 = vsel %vm1331, 1, 0
  %v1350 = vsel %vm1332, 1, 0
  %v1351 = vsel %vm1333, 1, 0
  %v1352 = vsel %vm1334, 1, 0
  %v1353 = vsel %vm1335, 1, 0
  %v1354 = vsel %vm1336, 1, 0
  %v1355 = vsel %vm1337, 1, 0
  %1356 = vset.pattern.permute.xlu0 0
  %1357 = vperm.xlu0 %1356, %v1338
  %v1358 = vpop.permute.xlu0 %1357
  %1359 = vset.pattern.permute.xlu0 0
  %1360 = vperm.xlu0 %1359, %v1339
  %v1361 = vpop.permute.xlu0 %1360
  %1362 = vset.pattern.permute.xlu0 0
  %1363 = vperm.xlu0 %1362, %v1340
  %v1364 = vpop.permute.xlu0 %1363
  %1365 = vset.pattern.permute.xlu0 0
  %1366 = vperm.xlu0 %1365, %v1341
  %v1367 = vpop.permute.xlu0 %1366
  %1368 = vset.pattern.permute.xlu0 0
  %1369 = vperm.xlu0 %1368, %v1342
  %v1370 = vpop.permute.xlu0 %1369
  %1371 = vset.pattern.permute.xlu0 0
  %1372 = vperm.xlu0 %1371, %v1343
  %v1373 = vpop.permute.xlu0 %1372
  %1374 = vset.pattern.permute.xlu0 0
  %1375 = vperm.xlu0 %1374, %v1344
  %v1376 = vpop.permute.xlu0 %1375
  %1377 = vset.pattern.permute.xlu0 0
  %1378 = vperm.xlu0 %1377, %v1345
  %v1379 = vpop.permute.xlu0 %1378
  %1380 = vset.pattern.permute.xlu0 0
  %1381 = vperm.xlu0 %1380, %v1346
  %v1382 = vpop.permute.xlu0 %1381
  %1383 = vset.pattern.permute.xlu0 0
  %1384 = vperm.xlu0 %1383, %v1347
  %v1385 = vpop.permute.xlu0 %1384
  %1386 = vset.pattern.permute.xlu0 0
  %1387 = vperm.xlu0 %1386, %v1348
  %v1388 = vpop.permute.xlu0 %1387
  %1389 = vset.pattern.permute.xlu0 0
  %1390 = vperm.xlu0 %1389, %v1349
  %v1391 = vpop.permute.xlu0 %1390
  %1392 = vset.pattern.permute.xlu0 0
  %1393 = vperm.xlu0 %1392, %v1350
  %v1394 = vpop.permute.xlu0 %1393
  %1395 = vset.pattern.permute.xlu0 0
  %1396 = vperm.xlu0 %1395, %v1351
  %v1397 = vpop.permute.xlu0 %1396
  %1398 = vset.pattern.permute.xlu0 0
  %1399 = vperm.xlu0 %1398, %v1352
  %v1400 = vpop.permute.xlu0 %1399
  %1401 = vset.pattern.permute.xlu0 0
  %1402 = vperm.xlu0 %1401, %v1353
  %v1403 = vpop.permute.xlu0 %1402
  %1404 = vset.pattern.permute.xlu0 0
  %1405 = vperm.xlu0 %1404, %v1354
  %v1406 = vpop.permute.xlu0 %1405
  %1407 = vset.pattern.permute.xlu0 0
  %1408 = vperm.xlu0 %1407, %v1355
  %v1409 = vpop.permute.xlu0 %1408
  %vm1410 = vcmp.eq.s32.totalorder %v1358, 1
  %vm1411 = vcmp.eq.s32.totalorder %v1361, 1
  %vm1412 = vcmp.eq.s32.totalorder %v1364, 1
  %vm1413 = vcmp.eq.s32.totalorder %v1367, 1
  %vm1414 = vcmp.eq.s32.totalorder %v1370, 1
  %vm1415 = vcmp.eq.s32.totalorder %v1373, 1
  %vm1416 = vcmp.eq.s32.totalorder %v1376, 1
  %vm1417 = vcmp.eq.s32.totalorder %v1379, 1
  %vm1418 = vcmp.eq.s32.totalorder %v1382, 1
  %vm1419 = vcmp.eq.s32.totalorder %v1385, 1
  %vm1420 = vcmp.eq.s32.totalorder %v1388, 1
  %vm1421 = vcmp.eq.s32.totalorder %v1391, 1
  %vm1422 = vcmp.eq.s32.totalorder %v1394, 1
  %vm1423 = vcmp.eq.s32.totalorder %v1397, 1
  %vm1424 = vcmp.eq.s32.totalorder %v1400, 1
  %vm1425 = vcmp.eq.s32.totalorder %v1403, 1
  %vm1426 = vcmp.eq.s32.totalorder %v1406, 1
  %vm1427 = vcmp.eq.s32.totalorder %v1409, 1
  %v1428 = vsel %vm1410, %v34, -1e+30
  %v1429 = vsel %vm1411, %v35, -1e+30
  %v1430 = vsel %vm1412, %v36, -1e+30
  %v1431 = vsel %vm1413, %v37, -1e+30
  %v1432 = vsel %vm1414, %v38, -1e+30
  %v1433 = vsel %vm1415, %v39, -1e+30
  %v1434 = vsel %vm1416, %v40, -1e+30
  %v1435 = vsel %vm1417, %v41, -1e+30
  %v1436 = vsel %vm1418, %v42, -1e+30
  %v1437 = vsel %vm1419, %v43, -1e+30
  %v1438 = vsel %vm1420, %v44, -1e+30
  %v1439 = vsel %vm1421, %v45, -1e+30
  %v1440 = vsel %vm1422, %v46, -1e+30
  %v1441 = vsel %vm1423, %v47, -1e+30
  %v1442 = vsel %vm1424, %v48, -1e+30
  %v1443 = vsel %vm1425, %v49, -1e+30
  %v1444 = vsel %vm1426, %v50, -1e+30
  %v1445 = vsel %vm1427, %v51, -1e+30
  %v1446 = vmax.f32 %v1428, %v1432
  %v1447 = vmax.f32 %v1429, %v1433
  %v1448 = vmax.f32 %v1430, %v1434
  %v1449 = vmax.f32 %v1431, %v1435
  %v1450 = vmax.f32 %v1446, %v1436
  %v1451 = vmax.f32 %v1447, %v1437
  %v1452 = vmax.f32 %v1448, %v1438
  %v1453 = vmax.f32 %v1449, %v1439
  %v1454 = vmax.f32 %v1450, %v1440
  %v1455 = vmax.f32 %v1451, %v1441
  %v1456 = vmax.f32 %v1452, %v1442
  %v1457 = vmax.f32 %v1453, %v1443
  %v1458 = vmax.f32 %v1454, %v1444
  %v1459 = vmax.f32 %v1455, %v1445
  %v1460 = vmax.f32 %v1458, %v1459
  %v1461 = vmax.f32 %v1456, %v1457
  %v1462 = vmax.f32 %v1460, %v1461
  %v1463 = vrot.slane %v1462, 4
  %v1464 = vmax.f32 %v1462, %v1463
  %v1465 = vrot.slane %v1464, 2
  %v1466 = vmax.f32 %v1464, %v1465
  %v1467 = vrot.slane %v1466, 1
  %v1468 = vmax.f32 %v1466, %v1467
  %vm1469 = vcmask 1040384
  %v1470 = vsel %vm1469, %v425, %v574
  %vm1471 = vcmask 1041408
  %v1472 = vsel %vm1471, %v1470, %v723
  %vm1473 = vcmask 1042432
  %v1474 = vsel %vm1473, %v1472, %v872
  %vm1475 = vcmask 1043456
  %v1476 = vsel %vm1475, %v1474, %v1021
  %vm1477 = vcmask 1044480
  %v1478 = vsel %vm1477, %v1476, %v1170
  %vm1479 = vcmask 1045504
  %v1480 = vsel %vm1479, %v1478, %v1319
  %vm1481 = vcmask 1046528
  %v1482 = vsel %vm1481, %v1480, %v1468
  %vm1483 = vcmp.gt.f32.partialorder %v56, 0.0
  %v1484 = vsel %vm1483, 1, 0
  %vm1485 = vcmp.eq.s32.totalorder %v1484, 1
  %v1486 = vsel %vm1485, %v1482, 0.0
  %v1487 = vld [vmem:[%s3] sm:$0xff]
  %v1488 = vld [vmem:[%s3 + $0x8] sm:$0xff]
  %v1489 = vld [vmem:[%s3 + $0x10] sm:$0xff]
  %v1490 = vld [vmem:[%s3 + $0x18] sm:$0xff]
  %v1491 = vld [vmem:[%s3 + $0x20] sm:$0xff]
  %v1492 = vld [vmem:[%s3 + $0x28] sm:$0xff]
  %v1493 = vld [vmem:[%s3 + $0x30] sm:$0xff]
  %v1494 = vld [vmem:[%s3 + $0x38] sm:$0xff]
  %v1495 = vld [vmem:[%s3 + $0x40] sm:$0xff]
  %v1496 = vld [vmem:[%s3 + $0x48] sm:$0xff]
  %v1497 = vld [vmem:[%s3 + $0x50] sm:$0xff]
  %v1498 = vld [vmem:[%s3 + $0x58] sm:$0xff]
  %v1499 = vld [vmem:[%s3 + $0x60] sm:$0xff]
  %v1500 = vld [vmem:[%s3 + $0x68] sm:$0xff]
  %v1501 = vld [vmem:[%s3 + $0x70] sm:$0xff]
  %v1502 = vld [vmem:[%s3 + $0x78] sm:$0xff]
  %v1503 = vld [vmem:[%s3 + $0x80] sm:$0xff]
  %v1504 = vld [vmem:[%s3 + $0x88] sm:$0xff]
  %v1505 = vld [vmem:[%s3 + $0x90] sm:$0xff]
  %v1506 = vld [vmem:[%s3 + $0x98] sm:$0xff]
  %v1507 = vld [vmem:[%s3 + $0xa0] sm:$0xff]
  %v1508 = vld [vmem:[%s3 + $0xa8] sm:$0xff]
  %v1509 = vld [vmem:[%s3 + $0xb0] sm:$0xff]
  %v1510 = vld [vmem:[%s3 + $0xb8] sm:$0xff]
  %v1511 = vld [vmem:[%s3 + $0xc0] sm:$0xff]
  %v1512 = vld [vmem:[%s3 + $0xc8] sm:$0xff]
  %v1513 = vld [vmem:[%s3 + $0xd0] sm:$0xff]
  %v1514 = vld [vmem:[%s3 + $0xd8] sm:$0xff]
  %v1515 = vld [vmem:[%s3 + $0xe0] sm:$0xff]
  %v1516 = vld [vmem:[%s3 + $0xe8] sm:$0xff]
  %v1517 = vld [vmem:[%s3 + $0xf0] sm:$0xff]
  %v1518 = vld [vmem:[%s3 + $0xf8] sm:$0xff]
  %v1519 = vld [vmem:[%s4] sm:$0x1]
  %v1521 = vlaneseq
  %v1522 = vshrl.u32 %v1521, 7
  %v1523 = vsub.s32 0, %v1522
  %v1524 = vrot.slane %v1519, %v1523
  %1526 = vmatprep.subr.mxu0 0.0
  %1527 = vmatpush1.msra.mxu0 %v1502
  %1528 = vmatprep.subr.mxu0 0.0
  %1529 = vmatpush1.msra.mxu0 %v1501
  %1530 = vmatprep.subr.mxu0 0.0
  %1531 = vmatpush1.msra.mxu0 %v1500
  %1532 = vmatprep.subr.mxu0 0.0
  %1533 = vmatpush1.msra.mxu0 %v1499
  %1534 = vmatprep.subr.mxu0 0.0
  %1535 = vmatpush1.msra.mxu0 %v1498
  %1536 = vmatprep.subr.mxu0 0.0
  %1537 = vmatpush1.msra.mxu0 %v1497
  %1538 = vmatprep.subr.mxu0 0.0
  %1539 = vmatpush1.msra.mxu0 %v1496
  %1540 = vmatprep.subr.mxu0 0.0
  %1541 = vmatpush1.msra.mxu0 %v1495
  %1542 = vmatprep.subr.mxu0 0.0
  %1543 = vmatpush1.msra.mxu0 %v1494
  %1544 = vmatprep.subr.mxu0 0.0
  %1545 = vmatpush1.msra.mxu0 %v1493
  %1546 = vmatprep.subr.mxu0 0.0
  %1547 = vmatpush1.msra.mxu0 %v1492
  %1548 = vmatprep.subr.mxu0 0.0
  %1549 = vmatpush1.msra.mxu0 %v1491
  %1550 = vmatprep.subr.mxu0 0.0
  %1551 = vmatpush1.msra.mxu0 %v1490
  %1552 = vmatprep.subr.mxu0 0.0
  %1553 = vmatpush1.msra.mxu0 %v1489
  %1554 = vmatprep.subr.mxu0 0.0
  %1555 = vmatpush1.msra.mxu0 %v1488
  %1556 = vmatprep.subr.mxu0 0.0
  %1557 = vmatpush1.msra.mxu0 %v1487
  %1558 = vmatprep.subr.mxu0 0.0
  %1559 = vmatpush2.msra.mxu0 %v1518
  %1560 = vmatprep.subr.mxu0 0.0
  %1561 = vmatpush2.msra.mxu0 %v1517
  %1562 = vmatprep.subr.mxu0 0.0
  %1563 = vmatpush2.msra.mxu0 %v1516
  %1564 = vmatprep.subr.mxu0 0.0
  %1565 = vmatpush2.msra.mxu0 %v1515
  %1566 = vmatprep.subr.mxu0 0.0
  %1567 = vmatpush2.msra.mxu0 %v1514
  %1568 = vmatprep.subr.mxu0 0.0
  %1569 = vmatpush2.msra.mxu0 %v1513
  %1570 = vmatprep.subr.mxu0 0.0
  %1571 = vmatpush2.msra.mxu0 %v1512
  %1572 = vmatprep.subr.mxu0 0.0
  %1573 = vmatpush2.msra.mxu0 %v1511
  %1574 = vmatprep.subr.mxu0 0.0
  %1575 = vmatpush2.msra.mxu0 %v1510
  %1576 = vmatprep.subr.mxu0 0.0
  %1577 = vmatpush2.msra.mxu0 %v1509
  %1578 = vmatprep.subr.mxu0 0.0
  %1579 = vmatpush2.msra.mxu0 %v1508
  %1580 = vmatprep.subr.mxu0 0.0
  %1581 = vmatpush2.msra.mxu0 %v1507
  %1582 = vmatprep.subr.mxu0 0.0
  %1583 = vmatpush2.msra.mxu0 %v1506
  %1584 = vmatprep.subr.mxu0 0.0
  %1585 = vmatpush2.msra.mxu0 %v1505
  %1586 = vmatprep.subr.mxu0 0.0
  %1587 = vmatpush2.msra.mxu0 %v1504
  %1588 = vmatprep.subr.mxu0 0.0
  %1589 = vmatpush2.msra.mxu0 %v1503
  %1590 = vmatprep.mubr.f32.mxu0 %v132
  %1591 = vmatmul.mubr.f32.gmra.mxu0 %v1486
  %v1592 = vpop.f32.mrf.mxu0
  %v1593 = vadd.f32 %v1524, %v1592
  %v1594 = vpop.f32.mrf.mxu0
  %1595 = vdwg.mxu0
  %v1596 = vmax.f32 %v1593, 0.0
  %v1597 = vld [vmem:[%s5] sm:$0xff]
  %v1598 = vld [vmem:[%s5 + $0x8] sm:$0xff]
  %v1599 = vld [vmem:[%s5 + $0x10] sm:$0xff]
  %v1600 = vld [vmem:[%s5 + $0x18] sm:$0xff]
  %v1601 = vld [vmem:[%s5 + $0x20] sm:$0xff]
  %v1602 = vld [vmem:[%s5 + $0x28] sm:$0xff]
  %v1603 = vld [vmem:[%s5 + $0x30] sm:$0xff]
  %v1604 = vld [vmem:[%s5 + $0x38] sm:$0xff]
  %v1605 = vld [vmem:[%s5 + $0x40] sm:$0xff]
  %v1606 = vld [vmem:[%s5 + $0x48] sm:$0xff]
  %v1607 = vld [vmem:[%s5 + $0x50] sm:$0xff]
  %v1608 = vld [vmem:[%s5 + $0x58] sm:$0xff]
  %v1609 = vld [vmem:[%s5 + $0x60] sm:$0xff]
  %v1610 = vld [vmem:[%s5 + $0x68] sm:$0xff]
  %v1611 = vld [vmem:[%s5 + $0x70] sm:$0xff]
  %v1612 = vld [vmem:[%s5 + $0x78] sm:$0xff]
  %v1613 = vld [vmem:[%s6] sm:$0x1]
  %v1615 = vlaneseq
  %v1616 = vshrl.u32 %v1615, 7
  %v1617 = vsub.s32 0, %v1616
  %v1618 = vrot.slane %v1613, %v1617
  %1620 = vmatprep.subr.mxu0 0.0
  %1621 = vmatpush1.msra.mxu0 %v1612
  %1622 = vmatprep.subr.mxu0 0.0
  %1623 = vmatpush1.msra.mxu0 %v1611
  %1624 = vmatprep.subr.mxu0 0.0
  %1625 = vmatpush1.msra.mxu0 %v1610
  %1626 = vmatprep.subr.mxu0 0.0
  %1627 = vmatpush1.msra.mxu0 %v1609
  %1628 = vmatprep.subr.mxu0 0.0
  %1629 = vmatpush1.msra.mxu0 %v1608
  %1630 = vmatprep.subr.mxu0 0.0
  %1631 = vmatpush1.msra.mxu0 %v1607
  %1632 = vmatprep.subr.mxu0 0.0
  %1633 = vmatpush1.msra.mxu0 %v1606
  %1634 = vmatprep.subr.mxu0 0.0
  %1635 = vmatpush1.msra.mxu0 %v1605
  %1636 = vmatprep.subr.mxu0 0.0
  %1637 = vmatpush1.msra.mxu0 %v1604
  %1638 = vmatprep.subr.mxu0 0.0
  %1639 = vmatpush1.msra.mxu0 %v1603
  %1640 = vmatprep.subr.mxu0 0.0
  %1641 = vmatpush1.msra.mxu0 %v1602
  %1642 = vmatprep.subr.mxu0 0.0
  %1643 = vmatpush1.msra.mxu0 %v1601
  %1644 = vmatprep.subr.mxu0 0.0
  %1645 = vmatpush1.msra.mxu0 %v1600
  %1646 = vmatprep.subr.mxu0 0.0
  %1647 = vmatpush1.msra.mxu0 %v1599
  %1648 = vmatprep.subr.mxu0 0.0
  %1649 = vmatpush1.msra.mxu0 %v1598
  %1650 = vmatprep.subr.mxu0 0.0
  %1651 = vmatpush1.msra.mxu0 %v1597
  %1652 = vmatprep.subr.mxu0 0.0
  %1653 = vmatpush2.msra.mxu0 0.0
  %1654 = vmatprep.subr.mxu0 0.0
  %1655 = vmatpush2.msra.mxu0 0.0
  %1656 = vmatprep.subr.mxu0 0.0
  %1657 = vmatpush2.msra.mxu0 0.0
  %1658 = vmatprep.subr.mxu0 0.0
  %1659 = vmatpush2.msra.mxu0 0.0
  %1660 = vmatprep.subr.mxu0 0.0
  %1661 = vmatpush2.msra.mxu0 0.0
  %1662 = vmatprep.subr.mxu0 0.0
  %1663 = vmatpush2.msra.mxu0 0.0
  %1664 = vmatprep.subr.mxu0 0.0
  %1665 = vmatpush2.msra.mxu0 0.0
  %1666 = vmatprep.subr.mxu0 0.0
  %1667 = vmatpush2.msra.mxu0 0.0
  %1668 = vmatprep.subr.mxu0 0.0
  %1669 = vmatpush2.msra.mxu0 0.0
  %1670 = vmatprep.subr.mxu0 0.0
  %1671 = vmatpush2.msra.mxu0 0.0
  %1672 = vmatprep.subr.mxu0 0.0
  %1673 = vmatpush2.msra.mxu0 0.0
  %1674 = vmatprep.subr.mxu0 0.0
  %1675 = vmatpush2.msra.mxu0 0.0
  %1676 = vmatprep.subr.mxu0 0.0
  %1677 = vmatpush2.msra.mxu0 0.0
  %1678 = vmatprep.subr.mxu0 0.0
  %1679 = vmatpush2.msra.mxu0 0.0
  %1680 = vmatprep.subr.mxu0 0.0
  %1681 = vmatpush2.msra.mxu0 0.0
  %1682 = vmatprep.subr.mxu0 0.0
  %1683 = vmatpush2.msra.mxu0 0.0
  %1684 = vmatprep.mubr.f32.mxu0 0.0
  %1685 = vmatmul.mubr.f32.gmra.mxu0 %v1596
  %v1686 = vpop.f32.mrf.mxu0
  %v1687 = vadd.f32 %v1618, %v1686
  %v1688 = vpop.f32.mrf.mxu0
  %1689 = vdwg.mxu0
  %v1690 = vmax.f32 %v1687, 0.0
  %v1691 = vld [vmem:[%s7] sm:$0xff]
  %v1692 = vld [vmem:[%s7 + $0x8] sm:$0xff]
  %v1693 = vld [vmem:[%s7 + $0x10] sm:$0xff]
  %v1694 = vld [vmem:[%s7 + $0x18] sm:$0xff]
  %v1695 = vld [vmem:[%s7 + $0x20] sm:$0xff]
  %v1696 = vld [vmem:[%s7 + $0x28] sm:$0xff]
  %v1697 = vld [vmem:[%s7 + $0x30] sm:$0xff]
  %v1698 = vld [vmem:[%s7 + $0x38] sm:$0xff]
  %v1699 = vld [vmem:[%s7 + $0x40] sm:$0xff]
  %v1700 = vld [vmem:[%s7 + $0x48] sm:$0xff]
  %v1701 = vld [vmem:[%s7 + $0x50] sm:$0xff]
  %v1702 = vld [vmem:[%s7 + $0x58] sm:$0xff]
  %v1703 = vld [vmem:[%s7 + $0x60] sm:$0xff]
  %v1704 = vld [vmem:[%s7 + $0x68] sm:$0xff]
  %v1705 = vld [vmem:[%s7 + $0x70] sm:$0xff]
  %v1706 = vld [vmem:[%s7 + $0x78] sm:$0xff]
  %v1707 = vld [vmem:[%s8] sm:$0x1]
  %v1709 = vlaneseq
  %v1710 = vshrl.u32 %v1709, 7
  %v1711 = vsub.s32 0, %v1710
  %v1712 = vrot.slane %v1707, %v1711
  %1714 = vmatprep.subr.mxu0 0.0
  %1715 = vmatpush1.msra.mxu0 %v1706
  %1716 = vmatprep.subr.mxu0 0.0
  %1717 = vmatpush1.msra.mxu0 %v1705
  %1718 = vmatprep.subr.mxu0 0.0
  %1719 = vmatpush1.msra.mxu0 %v1704
  %1720 = vmatprep.subr.mxu0 0.0
  %1721 = vmatpush1.msra.mxu0 %v1703
  %1722 = vmatprep.subr.mxu0 0.0
  %1723 = vmatpush1.msra.mxu0 %v1702
  %1724 = vmatprep.subr.mxu0 0.0
  %1725 = vmatpush1.msra.mxu0 %v1701
  %1726 = vmatprep.subr.mxu0 0.0
  %1727 = vmatpush1.msra.mxu0 %v1700
  %1728 = vmatprep.subr.mxu0 0.0
  %1729 = vmatpush1.msra.mxu0 %v1699
  %1730 = vmatprep.subr.mxu0 0.0
  %1731 = vmatpush1.msra.mxu0 %v1698
  %1732 = vmatprep.subr.mxu0 0.0
  %1733 = vmatpush1.msra.mxu0 %v1697
  %1734 = vmatprep.subr.mxu0 0.0
  %1735 = vmatpush1.msra.mxu0 %v1696
  %1736 = vmatprep.subr.mxu0 0.0
  %1737 = vmatpush1.msra.mxu0 %v1695
  %1738 = vmatprep.subr.mxu0 0.0
  %1739 = vmatpush1.msra.mxu0 %v1694
  %1740 = vmatprep.subr.mxu0 0.0
  %1741 = vmatpush1.msra.mxu0 %v1693
  %1742 = vmatprep.subr.mxu0 0.0
  %1743 = vmatpush1.msra.mxu0 %v1692
  %1744 = vmatprep.subr.mxu0 0.0
  %1745 = vmatpush1.msra.mxu0 %v1691
  %1746 = vmatprep.subr.mxu0 0.0
  %1747 = vmatpush2.msra.mxu0 0.0
  %1748 = vmatprep.subr.mxu0 0.0
  %1749 = vmatpush2.msra.mxu0 0.0
  %1750 = vmatprep.subr.mxu0 0.0
  %1751 = vmatpush2.msra.mxu0 0.0
  %1752 = vmatprep.subr.mxu0 0.0
  %1753 = vmatpush2.msra.mxu0 0.0
  %1754 = vmatprep.subr.mxu0 0.0
  %1755 = vmatpush2.msra.mxu0 0.0
  %1756 = vmatprep.subr.mxu0 0.0
  %1757 = vmatpush2.msra.mxu0 0.0
  %1758 = vmatprep.subr.mxu0 0.0
  %1759 = vmatpush2.msra.mxu0 0.0
  %1760 = vmatprep.subr.mxu0 0.0
  %1761 = vmatpush2.msra.mxu0 0.0
  %1762 = vmatprep.subr.mxu0 0.0
  %1763 = vmatpush2.msra.mxu0 0.0
  %1764 = vmatprep.subr.mxu0 0.0
  %1765 = vmatpush2.msra.mxu0 0.0
  %1766 = vmatprep.subr.mxu0 0.0
  %1767 = vmatpush2.msra.mxu0 0.0
  %1768 = vmatprep.subr.mxu0 0.0
  %1769 = vmatpush2.msra.mxu0 0.0
  %1770 = vmatprep.subr.mxu0 0.0
  %1771 = vmatpush2.msra.mxu0 0.0
  %1772 = vmatprep.subr.mxu0 0.0
  %1773 = vmatpush2.msra.mxu0 0.0
  %1774 = vmatprep.subr.mxu0 0.0
  %1775 = vmatpush2.msra.mxu0 0.0
  %1776 = vmatprep.subr.mxu0 0.0
  %1777 = vmatpush2.msra.mxu0 0.0
  %1778 = vmatprep.mubr.f32.mxu0 0.0
  %1779 = vmatmul.mubr.f32.gmra.mxu0 %v1690
  %v1780 = vpop.f32.mrf.mxu0
  %v1781 = vadd.f32 %v1712, %v1780
  %v1782 = vpop.f32.mrf.mxu0
  %1783 = vdwg.mxu0
  %1784 = vmax.xlane.f32.xlu0 %v1781
  %v1785 = vpop.xlane.xlu0 %1784
  %v1786 = vsub.f32 %v1781, %v1785
  %v1787 = vmul.f32 %v1786, 1.442695
  %v1788 = vpow.pop %v1787
  %1789 = vadd.xlane.f32.xlu0 %v1788
  %v1790 = vpop.xlane.xlu0 %1789
  %v1791 = vlog2.pop %v1790
  %v1792 = vmul.f32 %v1791, 0.6931472
  %v1793 = vsub.f32 %v1786, %v1792
  %1794 = vst [vmem:[%s9] sm:$0xff] %v1793
  // Predicated region
  $region38: #{net_forward.3} parent=0 // pred_check
    _
  $region39: #{net_forward.3} parent=0 // pred_check_branch
    %1796 = sbr.rel (0) target = $region41
  $region40: #{net_forward.3} parent=0 // pred_region
    _
  $region41: #{net_forward.3} parent=0 // pred_fallthru
    _
  // Predicated region
  $region42: #{net_forward.3} parent=0 // pred_check
    _
  $region43: #{net_forward.3} parent=0 // pred_check_branch
    %1798 = sbr.rel (0) target = $region45
  $region44: #{net_forward.3} parent=0 // pred_region
    _
  $region45: #{net_forward.3} parent=0 // pred_fallthru
    _

</llo_original>
